<compile_context>
chip_gen: v7x
topology: tpu7x:2x2x1
jax: 0.10.0
libtpu: 0.0.40
codegen_flags: <defaults>
</compile_context>

<pallas_src>
import jax
import jax.numpy as jnp
from jax import lax
from jax.experimental import pallas as pl
from jax.experimental.pallas import tpu as pltpu


def bottleneck_kernel(x_ref, w1_ref, s1_ref, b1_ref,
                      w2_ref, s2_ref, b2_ref,
                      w3_ref, s3_ref, b3_ref,
                      o_ref):
    """One batch image per grid step, everything channels-last.

    x_ref : (1, H, W, Cin)     input block (f32)
    w1_ref: (Cin, width)       conv1 (1x1) weight, matmul form (f32 or bf16)
    w2_ref: (9, width, width)  conv2 (3x3) weight, (kh*3+kw, Cin, Cout)
    w3_ref: (width, Cout)      conv3 (1x1) weight
    s*/b* : (1, C)             folded eval-mode BatchNorm scale / bias (f32)
    o_ref : (1, H, W, Cout)
    """
    _, H, W, Cin = x_ref.shape
    width = w1_ref.shape[1]
    Cout = w3_ref.shape[1]
    M = H * W
    mm_dtype = w1_ref.dtype        # matmul operand dtype (f32 or bf16)

    # ---- conv1 (1x1) + BN1 + ReLU : pointwise conv == channel matmul ----
    x = x_ref[...].reshape(M, Cin)
    h1 = jnp.dot(x.astype(mm_dtype), w1_ref[...],
                 preferred_element_type=jnp.float32)
    h1 = jnp.maximum(h1 * s1_ref[...] + b1_ref[...], 0.0)            # (M, width) f32

    # ---- conv2 (3x3, stride=1, pad=1) ----
    # Destination-pixel coordinates (built once, no integer division at runtime).
    yy = lax.broadcasted_iota(jnp.int32, (H, W, 1), 0).reshape(M, 1)
    xx = lax.broadcasted_iota(jnp.int32, (H, W, 1), 1).reshape(M, 1)

    def tap_slab(k):
        oy = k // 3 - 1
        ox = k % 3 - 1
        if oy == 0 and ox == 0:
            return h1                          # interior tap: no shift, no mask
        # shifted[m] = h1[m + oy*W + ox]  (flattened row-major), zero outside image
        shift = (-(oy * W + ox)) % M
        rolled = pltpu.roll(h1, shift=shift, axis=0)
        valid = ((yy + oy >= 0) & (yy + oy < H) &
                 (xx + ox >= 0) & (xx + ox < W))
        return jnp.where(valid, rolled, 0.0)

    if width % 128 == 0:
        # Lane-aligned: channel-concat the 9 taps and issue a single matmul with
        # K = 9*width -> much better MXU contraction-dim fill than K = width taps.
        im2col = jnp.concatenate(
            [tap_slab(k).astype(mm_dtype) for k in range(9)], axis=1)   # (M, 9*width)
        w2_mat = w2_ref[...].reshape(9 * width, width)
        h2 = jnp.dot(im2col, w2_mat, preferred_element_type=jnp.float32)
    else:
        # Small / unaligned width: 9 accumulated matmuls (static unroll).
        h2 = None
        for k in range(9):
            tap = jnp.dot(tap_slab(k).astype(mm_dtype), w2_ref[k],
                          preferred_element_type=jnp.float32)
            h2 = tap if h2 is None else h2 + tap

    h2 = jnp.maximum(h2 * s2_ref[...] + b2_ref[...], 0.0)             # (M, width) f32

    # ---- conv3 (1x1) + BN3 + residual add + ReLU ----
    h3 = jnp.dot(h2.astype(mm_dtype), w3_ref[...],
                 preferred_element_type=jnp.float32)
    h3 = h3 * s3_ref[...] + b3_ref[...]
    identity = x_ref[...].reshape(M, Cout).astype(jnp.float32)        # re-read block
    out = jnp.maximum(h3 + identity, 0.0)
    o_ref[...] = out.reshape(1, H, W, Cout).astype(o_ref.dtype)


def bottleneck_pallas(x_nhwc, w1, s1, b1, w2, s2, b2, w3, s3, b3,
                      *, matmul_dtype=jnp.float32,
                      vmem_limit_bytes=32 * 1024 * 1024):
    """NHWC in / NHWC out. Weights in channels-last matmul form, BN pre-folded."""
    N, H, W, Cin = x_nhwc.shape
    width = w1.shape[1]
    Cout = w3.shape[1]
    assert Cin == Cout, "identity shortcut requires Cin == Cout (no downsample)"
    assert w2.shape == (9, width, width)

    # Matmul operands may be bf16 (MXU-native); BN/ReLU/residual stays f32 in-kernel.
    w1 = w1.astype(matmul_dtype)
    w2 = w2.astype(matmul_dtype)
    w3 = w3.astype(matmul_dtype)

    const2 = lambda n: (0, 0)
    const3 = lambda n: (0, 0, 0)
    in_specs = [
        pl.BlockSpec((1, H, W, Cin), lambda n: (n, 0, 0, 0)),   # x : pipelined per image
        pl.BlockSpec((Cin, width), const2),                     # w1: resident in VMEM
        pl.BlockSpec((1, width), const2),                       # s1
        pl.BlockSpec((1, width), const2),                       # b1
        pl.BlockSpec((9, width, width), const3),                # w2
        pl.BlockSpec((1, width), const2),                       # s2
        pl.BlockSpec((1, width), const2),                       # b2
        pl.BlockSpec((width, Cout), const2),                    # w3
        pl.BlockSpec((1, Cout), const2),                        # s3
        pl.BlockSpec((1, Cout), const2),                        # b3
    ]
    out_specs = pl.BlockSpec((1, H, W, Cout), lambda n: (n, 0, 0, 0))

    wsize = jnp.dtype(matmul_dtype).itemsize
    flops = 2 * N * H * W * (Cin * width + 9 * width * width + width * Cout)
    bytes_accessed = (
        x_nhwc.size * x_nhwc.dtype.itemsize
        + N * H * W * Cout * x_nhwc.dtype.itemsize
        + (w1.size + w2.size + w3.size) * wsize
        + (s1.size + b1.size + s2.size + b2.size + s3.size + b3.size) * 4
    )

    grid_spec = pltpu.PrefetchScalarGridSpec(
        num_scalar_prefetch=0,
        grid=(N,),
        in_specs=in_specs,
        out_specs=out_specs,
    )
    return pl.pallas_call(
        bottleneck_kernel,
        out_shape=jax.ShapeDtypeStruct((N, H, W, Cout), x_nhwc.dtype),
        grid_spec=grid_spec,
        compiler_params=pltpu.CompilerParams(
            dimension_semantics=("parallel",),      # shard images across TCs on v7x
            vmem_limit_bytes=vmem_limit_bytes),
        cost_estimate=pl.CostEstimate(flops=flops, transcendentals=0,
                                      bytes_accessed=bytes_accessed),
    )(x_nhwc, w1, s1, b1, w2, s2, b2, w3, s3, b3)


# ---------------- reference (pure JAX, PyTorch NCHW/OIHW convention) ----------------
def _conv_nchw(x, w, stride, padding):
    return lax.conv_general_dilated(
        x, w, (stride, stride), [(padding, padding), (padding, padding)],
        dimension_numbers=('NCHW', 'OIHW', 'NCHW'))


def _bn_eval(x, gamma, beta, mean, var, eps=1e-5):
    inv = gamma / jnp.sqrt(var + eps)
    return x * inv[None, :, None, None] + (beta - mean * inv)[None, :, None, None]


def bottleneck_reference(x, p):
    out = jax.nn.relu(_bn_eval(_conv_nchw(x, p['w1'], 1, 0), *p['bn1']))
    out = jax.nn.relu(_bn_eval(_conv_nchw(out, p['w2'], 1, 1), *p['bn2']))
    out = _bn_eval(_conv_nchw(out, p['w3'], 1, 0), *p['bn3'])
    return jax.nn.relu(out + x)


def _run_case(seed, N, inplanes, planes, H, W):
    """Build a Bottleneck config, run kernel (f32 + bf16 matmuls), check vs JAX ref."""
    width = planes                   # base_width=64, groups=1 -> width = planes
    outplanes = planes * 4           # expansion = 4
    assert outplanes == inplanes, "identity shortcut requires inplanes == planes*4"

    key = jax.random.PRNGKey(seed)
    ks = jax.random.split(key, 8)
    x_nchw = jax.random.normal(ks[0], (N, inplanes, H, W), jnp.float32)

    def bn_params(k, c):
        k1, k2, k3, k4 = jax.random.split(k, 4)
        gamma = 1.0 + 0.1 * jax.random.normal(k1, (c,), jnp.float32)
        beta = 0.1 * jax.random.normal(k2, (c,), jnp.float32)
        mean = 0.1 * jax.random.normal(k3, (c,), jnp.float32)
        var = 1.0 + 0.1 * jax.random.uniform(k4, (c,), jnp.float32)
        return gamma, beta, mean, var

    # Fan-in-normalized weights keep activations O(1) so tolerances are meaningful.
    p = {
        'w1': jax.random.normal(ks[1], (width, inplanes, 1, 1), jnp.float32)
              / jnp.sqrt(jnp.float32(inplanes)),
        'bn1': bn_params(ks[2], width),
        'w2': jax.random.normal(ks[3], (width, width, 3, 3), jnp.float32)
              / jnp.sqrt(jnp.float32(9 * width)),
        'bn2': bn_params(ks[4], width),
        'w3': jax.random.normal(ks[5], (outplanes, width, 1, 1), jnp.float32)
              / jnp.sqrt(jnp.float32(width)),
        'bn3': bn_params(ks[6], outplanes),
    }

    # Fold BN (eval mode) into per-channel scale/bias; reshape conv weights to the
    # channels-last matmul form used by the kernel.
    def fold(bn):
        gamma, beta, mean, var = bn
        scale = gamma / jnp.sqrt(var + 1e-5)
        bias = beta - mean * scale
        return scale[None, :], bias[None, :]

    s1, b1 = fold(p['bn1'])
    s2, b2 = fold(p['bn2'])
    s3, b3 = fold(p['bn3'])
    w1_k = jnp.transpose(p['w1'][:, :, 0, 0], (1, 0))                     # (Cin, width)
    w2_k = jnp.transpose(p['w2'], (2, 3, 1, 0)).reshape(9, width, width)  # (kh*3+kw, in, out)
    w3_k = jnp.transpose(p['w3'][:, :, 0, 0], (1, 0))                     # (width, Cout)

    ref = jax.block_until_ready(bottleneck_reference(x_nchw, p))

    # Kernel operates in NHWC; convert once at the model boundary (outside the kernel).
    x_nhwc = jnp.transpose(x_nchw, (0, 2, 3, 1))

    # f32 matmuls: tight check of the roll/mask 3x3 formulation.
    out_f32 = jax.block_until_ready(
        bottleneck_pallas(x_nhwc, w1_k, s1, b1, w2_k, s2, b2, w3_k, s3, b3,
                          matmul_dtype=jnp.float32))
    out_f32 = jnp.transpose(out_f32, (0, 3, 1, 2))
    assert out_f32.shape == (N, outplanes, H, W)
    assert jnp.allclose(out_f32, ref, atol=5e-4, rtol=5e-4), (
        f"f32 max abs err {jnp.max(jnp.abs(out_f32 - ref))}")

    # bf16 matmul operands (MXU-native), f32 accumulate + f32 epilogue.
    out_bf16 = jax.block_until_ready(
        bottleneck_pallas(x_nhwc, w1_k, s1, b1, w2_k, s2, b2, w3_k, s3, b3,
                          matmul_dtype=jnp.bfloat16))
    out_bf16 = jnp.transpose(out_bf16, (0, 3, 1, 2))
    assert jnp.allclose(out_bf16, ref, atol=1.5e-1, rtol=1.5e-1), (
        f"bf16 max abs err {jnp.max(jnp.abs(out_bf16 - ref))}")


if __name__ == "__main__":
    # Case 1: small width (width=8) -> exercises the per-tap accumulation path.
    _run_case(seed=0, N=2, inplanes=32, planes=8, H=8, W=8)
    # Case 2: lane-aligned ResNet-like width (width=128) -> exercises the fused
    # single-matmul (K = 9*width) im2col path; spatial kept tiny so it stays cheap.
    _run_case(seed=1, N=2, inplanes=512, planes=128, H=8, W=8)
    print("KERNEL_OK")
</pallas_src>

<mosaic_0001>
module attributes {stable_mosaic.version = 11 : i64} {
  func.func @bottleneck_kernel(%arg0: i32, %arg1: memref<1x8x8x32xf32, #tpu.memory_space<vmem>>, %arg2: memref<32x8xf32, #tpu.memory_space<vmem>>, %arg3: memref<1x8xf32, #tpu.memory_space<vmem>>, %arg4: memref<1x8xf32, #tpu.memory_space<vmem>>, %arg5: memref<9x8x8xf32, #tpu.memory_space<vmem>>, %arg6: memref<1x8xf32, #tpu.memory_space<vmem>>, %arg7: memref<1x8xf32, #tpu.memory_space<vmem>>, %arg8: memref<8x32xf32, #tpu.memory_space<vmem>>, %arg9: memref<1x32xf32, #tpu.memory_space<vmem>>, %arg10: memref<1x32xf32, #tpu.memory_space<vmem>>, %arg11: memref<1x8x8x32xf32, #tpu.memory_space<vmem>>) attributes {dimension_semantics = [#tpu.dimension_semantics<parallel>], iteration_bounds = array<i64: 2>, scalar_prefetch = 0 : i64, scratch_operands = 0 : i64, tpu.core_type = #tpu.core_type<tc>, window_params = [{transform_indices = @transform_0, window_bounds = array<i64: 1, 8, 8, 32>}, {pipeline_mode = #tpu.pipeline_mode<synchronous>, transform_indices = @transform_1, window_bounds = array<i64: 32, 8>}, {pipeline_mode = #tpu.pipeline_mode<synchronous>, transform_indices = @transform_2, window_bounds = array<i64: 1, 8>}, {pipeline_mode = #tpu.pipeline_mode<synchronous>, transform_indices = @transform_3, window_bounds = array<i64: 1, 8>}, {pipeline_mode = #tpu.pipeline_mode<synchronous>, transform_indices = @transform_4, window_bounds = array<i64: 9, 8, 8>}, {pipeline_mode = #tpu.pipeline_mode<synchronous>, transform_indices = @transform_5, window_bounds = array<i64: 1, 8>}, {pipeline_mode = #tpu.pipeline_mode<synchronous>, transform_indices = @transform_6, window_bounds = array<i64: 1, 8>}, {pipeline_mode = #tpu.pipeline_mode<synchronous>, transform_indices = @transform_7, window_bounds = array<i64: 8, 32>}, {pipeline_mode = #tpu.pipeline_mode<synchronous>, transform_indices = @transform_8, window_bounds = array<i64: 1, 32>}, {pipeline_mode = #tpu.pipeline_mode<synchronous>, transform_indices = @transform_9, window_bounds = array<i64: 1, 32>}, {transform_indices = @transform_10, window_bounds = array<i64: 1, 8, 8, 32>}]} {
    %c0 = arith.constant 0 : index
    %c0_0 = arith.constant 0 : index
    %c0_1 = arith.constant 0 : index
    %c0_2 = arith.constant 0 : index
    %0 = vector.load %arg1[%c0, %c0_0, %c0_1, %c0_2] : memref<1x8x8x32xf32, #tpu.memory_space<vmem>>, vector<1x8x8x32xf32>
    %1 = vector.shape_cast %0 : vector<1x8x8x32xf32> to vector<64x32xf32>
    %c0_3 = arith.constant 0 : index
    %c0_4 = arith.constant 0 : index
    %2 = vector.load %arg2[%c0_3, %c0_4] : memref<32x8xf32, #tpu.memory_space<vmem>>, vector<32x8xf32>
    %cst = arith.constant dense<0.000000e+00> : vector<64x8xf32>
    %3 = tpu.matmul %1, %2, %cst {dimension_numbers = #tpu.dot_dimension_numbers<[1], [0], [0], [1], [0, 0, 1, 1], [], []>} : vector<64x32xf32>, vector<32x8xf32>, vector<64x8xf32> -> vector<64x8xf32>
    %c0_5 = arith.constant 0 : index
    %c0_6 = arith.constant 0 : index
    %4 = vector.load %arg3[%c0_5, %c0_6] : memref<1x8xf32, #tpu.memory_space<vmem>>, vector<1x8xf32>
    %5 = vector.broadcast %4 : vector<1x8xf32> to vector<64x8xf32>
    %6 = arith.mulf %3, %5 : vector<64x8xf32>
    %c0_7 = arith.constant 0 : index
    %c0_8 = arith.constant 0 : index
    %7 = vector.load %arg4[%c0_7, %c0_8] : memref<1x8xf32, #tpu.memory_space<vmem>>, vector<1x8xf32>
    %8 = vector.broadcast %7 : vector<1x8xf32> to vector<64x8xf32>
    %9 = arith.addf %6, %8 : vector<64x8xf32>
    %cst_9 = arith.constant 0.000000e+00 : f32
    %10 = vector.broadcast %cst_9 : f32 to vector<64x8xf32>
    %11 = arith.maximumf %9, %10 : vector<64x8xf32>
    %12 = tpu.iota {dimensions = array<i32: 0>} : vector<8x8x1xi32>
    %13 = vector.shape_cast %12 : vector<8x8x1xi32> to vector<64x1xi32>
    %14 = tpu.iota {dimensions = array<i32: 1>} : vector<8x8x1xi32>
    %15 = vector.shape_cast %14 : vector<8x8x1xi32> to vector<64x1xi32>
    %c9_i32 = arith.constant 9 : i32
    %16 = tpu.dynamic_rotate %11 by %c9_i32 dim 0 : vector<64x8xf32>, i32 -> vector<64x8xf32>
    %c-1_i32 = arith.constant -1 : i32
    %17 = vector.broadcast %c-1_i32 : i32 to vector<64x1xi32>
    %18 = arith.addi %13, %17 : vector<64x1xi32>
    %c0_i32 = arith.constant 0 : i32
    %19 = vector.broadcast %c0_i32 : i32 to vector<64x1xi32>
    %20 = arith.cmpi sge, %18, %19 : vector<64x1xi32>
    %c-1_i32_10 = arith.constant -1 : i32
    %21 = vector.broadcast %c-1_i32_10 : i32 to vector<64x1xi32>
    %22 = arith.addi %13, %21 : vector<64x1xi32>
    %c8_i32 = arith.constant 8 : i32
    %23 = vector.broadcast %c8_i32 : i32 to vector<64x1xi32>
    %24 = arith.cmpi slt, %22, %23 : vector<64x1xi32>
    %25 = arith.andi %20, %24 : vector<64x1xi1>
    %c-1_i32_11 = arith.constant -1 : i32
    %26 = vector.broadcast %c-1_i32_11 : i32 to vector<64x1xi32>
    %27 = arith.addi %15, %26 : vector<64x1xi32>
    %c0_i32_12 = arith.constant 0 : i32
    %28 = vector.broadcast %c0_i32_12 : i32 to vector<64x1xi32>
    %29 = arith.cmpi sge, %27, %28 : vector<64x1xi32>
    %30 = arith.andi %25, %29 : vector<64x1xi1>
    %c-1_i32_13 = arith.constant -1 : i32
    %31 = vector.broadcast %c-1_i32_13 : i32 to vector<64x1xi32>
    %32 = arith.addi %15, %31 : vector<64x1xi32>
    %c8_i32_14 = arith.constant 8 : i32
    %33 = vector.broadcast %c8_i32_14 : i32 to vector<64x1xi32>
    %34 = arith.cmpi slt, %32, %33 : vector<64x1xi32>
    %35 = arith.andi %30, %34 : vector<64x1xi1>
    %cst_15 = arith.constant 0.000000e+00 : f32
    %36 = vector.shape_cast %35 : vector<64x1xi1> to vector<64x1xi1>
    %37 = vector.broadcast %36 : vector<64x1xi1> to vector<64x8xi1>
    %38 = vector.broadcast %cst_15 : f32 to vector<64x8xf32>
    %39 = arith.select %37, %16, %38 : vector<64x8xi1>, vector<64x8xf32>
    %c0_16 = arith.constant 0 : index
    %c0_17 = arith.constant 0 : index
    %c0_18 = arith.constant 0 : index
    %40 = vector.load %arg5[%c0_16, %c0_17, %c0_18] : memref<9x8x8xf32, #tpu.memory_space<vmem>>, vector<1x8x8xf32>
    %41 = vector.shape_cast %40 : vector<1x8x8xf32> to vector<8x8xf32>
    %cst_19 = arith.constant dense<0.000000e+00> : vector<64x8xf32>
    %42 = tpu.matmul %39, %41, %cst_19 {dimension_numbers = #tpu.dot_dimension_numbers<[1], [0], [0], [1], [0, 0, 1, 1], [], []>} : vector<64x8xf32>, vector<8x8xf32>, vector<64x8xf32> -> vector<64x8xf32>
    %c8_i32_20 = arith.constant 8 : i32
    %43 = tpu.dynamic_rotate %11 by %c8_i32_20 dim 0 : vector<64x8xf32>, i32 -> vector<64x8xf32>
    %c-1_i32_21 = arith.constant -1 : i32
    %44 = vector.broadcast %c-1_i32_21 : i32 to vector<64x1xi32>
    %45 = arith.addi %13, %44 : vector<64x1xi32>
    %c0_i32_22 = arith.constant 0 : i32
    %46 = vector.broadcast %c0_i32_22 : i32 to vector<64x1xi32>
    %47 = arith.cmpi sge, %45, %46 : vector<64x1xi32>
    %c-1_i32_23 = arith.constant -1 : i32
    %48 = vector.broadcast %c-1_i32_23 : i32 to vector<64x1xi32>
    %49 = arith.addi %13, %48 : vector<64x1xi32>
    %c8_i32_24 = arith.constant 8 : i32
    %50 = vector.broadcast %c8_i32_24 : i32 to vector<64x1xi32>
    %51 = arith.cmpi slt, %49, %50 : vector<64x1xi32>
    %52 = arith.andi %47, %51 : vector<64x1xi1>
    %c0_i32_25 = arith.constant 0 : i32
    %53 = vector.broadcast %c0_i32_25 : i32 to vector<64x1xi32>
    %54 = arith.addi %15, %53 : vector<64x1xi32>
    %c0_i32_26 = arith.constant 0 : i32
    %55 = vector.broadcast %c0_i32_26 : i32 to vector<64x1xi32>
    %56 = arith.cmpi sge, %54, %55 : vector<64x1xi32>
    %57 = arith.andi %52, %56 : vector<64x1xi1>
    %c0_i32_27 = arith.constant 0 : i32
    %58 = vector.broadcast %c0_i32_27 : i32 to vector<64x1xi32>
    %59 = arith.addi %15, %58 : vector<64x1xi32>
    %c8_i32_28 = arith.constant 8 : i32
    %60 = vector.broadcast %c8_i32_28 : i32 to vector<64x1xi32>
    %61 = arith.cmpi slt, %59, %60 : vector<64x1xi32>
    %62 = arith.andi %57, %61 : vector<64x1xi1>
    %cst_29 = arith.constant 0.000000e+00 : f32
    %63 = vector.shape_cast %62 : vector<64x1xi1> to vector<64x1xi1>
    %64 = vector.broadcast %63 : vector<64x1xi1> to vector<64x8xi1>
    %65 = vector.broadcast %cst_29 : f32 to vector<64x8xf32>
    %66 = arith.select %64, %43, %65 : vector<64x8xi1>, vector<64x8xf32>
    %c1 = arith.constant 1 : index
    %c0_30 = arith.constant 0 : index
    %c0_31 = arith.constant 0 : index
    %67 = vector.load %arg5[%c1, %c0_30, %c0_31] : memref<9x8x8xf32, #tpu.memory_space<vmem>>, vector<1x8x8xf32>
    %68 = vector.shape_cast %67 : vector<1x8x8xf32> to vector<8x8xf32>
    %cst_32 = arith.constant dense<0.000000e+00> : vector<64x8xf32>
    %69 = tpu.matmul %66, %68, %cst_32 {dimension_numbers = #tpu.dot_dimension_numbers<[1], [0], [0], [1], [0, 0, 1, 1], [], []>} : vector<64x8xf32>, vector<8x8xf32>, vector<64x8xf32> -> vector<64x8xf32>
    %70 = arith.addf %42, %69 : vector<64x8xf32>
    %c7_i32 = arith.constant 7 : i32
    %71 = tpu.dynamic_rotate %11 by %c7_i32 dim 0 : vector<64x8xf32>, i32 -> vector<64x8xf32>
    %c-1_i32_33 = arith.constant -1 : i32
    %72 = vector.broadcast %c-1_i32_33 : i32 to vector<64x1xi32>
    %73 = arith.addi %13, %72 : vector<64x1xi32>
    %c0_i32_34 = arith.constant 0 : i32
    %74 = vector.broadcast %c0_i32_34 : i32 to vector<64x1xi32>
    %75 = arith.cmpi sge, %73, %74 : vector<64x1xi32>
    %c-1_i32_35 = arith.constant -1 : i32
    %76 = vector.broadcast %c-1_i32_35 : i32 to vector<64x1xi32>
    %77 = arith.addi %13, %76 : vector<64x1xi32>
    %c8_i32_36 = arith.constant 8 : i32
    %78 = vector.broadcast %c8_i32_36 : i32 to vector<64x1xi32>
    %79 = arith.cmpi slt, %77, %78 : vector<64x1xi32>
    %80 = arith.andi %75, %79 : vector<64x1xi1>
    %c1_i32 = arith.constant 1 : i32
    %81 = vector.broadcast %c1_i32 : i32 to vector<64x1xi32>
    %82 = arith.addi %15, %81 : vector<64x1xi32>
    %c0_i32_37 = arith.constant 0 : i32
    %83 = vector.broadcast %c0_i32_37 : i32 to vector<64x1xi32>
    %84 = arith.cmpi sge, %82, %83 : vector<64x1xi32>
    %85 = arith.andi %80, %84 : vector<64x1xi1>
    %c1_i32_38 = arith.constant 1 : i32
    %86 = vector.broadcast %c1_i32_38 : i32 to vector<64x1xi32>
    %87 = arith.addi %15, %86 : vector<64x1xi32>
    %c8_i32_39 = arith.constant 8 : i32
    %88 = vector.broadcast %c8_i32_39 : i32 to vector<64x1xi32>
    %89 = arith.cmpi slt, %87, %88 : vector<64x1xi32>
    %90 = arith.andi %85, %89 : vector<64x1xi1>
    %cst_40 = arith.constant 0.000000e+00 : f32
    %91 = vector.shape_cast %90 : vector<64x1xi1> to vector<64x1xi1>
    %92 = vector.broadcast %91 : vector<64x1xi1> to vector<64x8xi1>
    %93 = vector.broadcast %cst_40 : f32 to vector<64x8xf32>
    %94 = arith.select %92, %71, %93 : vector<64x8xi1>, vector<64x8xf32>
    %c2 = arith.constant 2 : index
    %c0_41 = arith.constant 0 : index
    %c0_42 = arith.constant 0 : index
    %95 = vector.load %arg5[%c2, %c0_41, %c0_42] : memref<9x8x8xf32, #tpu.memory_space<vmem>>, vector<1x8x8xf32>
    %96 = vector.shape_cast %95 : vector<1x8x8xf32> to vector<8x8xf32>
    %cst_43 = arith.constant dense<0.000000e+00> : vector<64x8xf32>
    %97 = tpu.matmul %94, %96, %cst_43 {dimension_numbers = #tpu.dot_dimension_numbers<[1], [0], [0], [1], [0, 0, 1, 1], [], []>} : vector<64x8xf32>, vector<8x8xf32>, vector<64x8xf32> -> vector<64x8xf32>
    %98 = arith.addf %70, %97 : vector<64x8xf32>
    %c1_i32_44 = arith.constant 1 : i32
    %99 = tpu.dynamic_rotate %11 by %c1_i32_44 dim 0 : vector<64x8xf32>, i32 -> vector<64x8xf32>
    %c0_i32_45 = arith.constant 0 : i32
    %100 = vector.broadcast %c0_i32_45 : i32 to vector<64x1xi32>
    %101 = arith.addi %13, %100 : vector<64x1xi32>
    %c0_i32_46 = arith.constant 0 : i32
    %102 = vector.broadcast %c0_i32_46 : i32 to vector<64x1xi32>
    %103 = arith.cmpi sge, %101, %102 : vector<64x1xi32>
    %c0_i32_47 = arith.constant 0 : i32
    %104 = vector.broadcast %c0_i32_47 : i32 to vector<64x1xi32>
    %105 = arith.addi %13, %104 : vector<64x1xi32>
    %c8_i32_48 = arith.constant 8 : i32
    %106 = vector.broadcast %c8_i32_48 : i32 to vector<64x1xi32>
    %107 = arith.cmpi slt, %105, %106 : vector<64x1xi32>
    %108 = arith.andi %103, %107 : vector<64x1xi1>
    %c-1_i32_49 = arith.constant -1 : i32
    %109 = vector.broadcast %c-1_i32_49 : i32 to vector<64x1xi32>
    %110 = arith.addi %15, %109 : vector<64x1xi32>
    %c0_i32_50 = arith.constant 0 : i32
    %111 = vector.broadcast %c0_i32_50 : i32 to vector<64x1xi32>
    %112 = arith.cmpi sge, %110, %111 : vector<64x1xi32>
    %113 = arith.andi %108, %112 : vector<64x1xi1>
    %c-1_i32_51 = arith.constant -1 : i32
    %114 = vector.broadcast %c-1_i32_51 : i32 to vector<64x1xi32>
    %115 = arith.addi %15, %114 : vector<64x1xi32>
    %c8_i32_52 = arith.constant 8 : i32
    %116 = vector.broadcast %c8_i32_52 : i32 to vector<64x1xi32>
    %117 = arith.cmpi slt, %115, %116 : vector<64x1xi32>
    %118 = arith.andi %113, %117 : vector<64x1xi1>
    %cst_53 = arith.constant 0.000000e+00 : f32
    %119 = vector.shape_cast %118 : vector<64x1xi1> to vector<64x1xi1>
    %120 = vector.broadcast %119 : vector<64x1xi1> to vector<64x8xi1>
    %121 = vector.broadcast %cst_53 : f32 to vector<64x8xf32>
    %122 = arith.select %120, %99, %121 : vector<64x8xi1>, vector<64x8xf32>
    %c3 = arith.constant 3 : index
    %c0_54 = arith.constant 0 : index
    %c0_55 = arith.constant 0 : index
    %123 = vector.load %arg5[%c3, %c0_54, %c0_55] : memref<9x8x8xf32, #tpu.memory_space<vmem>>, vector<1x8x8xf32>
    %124 = vector.shape_cast %123 : vector<1x8x8xf32> to vector<8x8xf32>
    %cst_56 = arith.constant dense<0.000000e+00> : vector<64x8xf32>
    %125 = tpu.matmul %122, %124, %cst_56 {dimension_numbers = #tpu.dot_dimension_numbers<[1], [0], [0], [1], [0, 0, 1, 1], [], []>} : vector<64x8xf32>, vector<8x8xf32>, vector<64x8xf32> -> vector<64x8xf32>
    %126 = arith.addf %98, %125 : vector<64x8xf32>
    %c4 = arith.constant 4 : index
    %c0_57 = arith.constant 0 : index
    %c0_58 = arith.constant 0 : index
    %127 = vector.load %arg5[%c4, %c0_57, %c0_58] : memref<9x8x8xf32, #tpu.memory_space<vmem>>, vector<1x8x8xf32>
    %128 = vector.shape_cast %127 : vector<1x8x8xf32> to vector<8x8xf32>
    %cst_59 = arith.constant dense<0.000000e+00> : vector<64x8xf32>
    %129 = tpu.matmul %11, %128, %cst_59 {dimension_numbers = #tpu.dot_dimension_numbers<[1], [0], [0], [1], [0, 0, 1, 1], [], []>} : vector<64x8xf32>, vector<8x8xf32>, vector<64x8xf32> -> vector<64x8xf32>
    %130 = arith.addf %126, %129 : vector<64x8xf32>
    %c63_i32 = arith.constant 63 : i32
    %131 = tpu.dynamic_rotate %11 by %c63_i32 dim 0 : vector<64x8xf32>, i32 -> vector<64x8xf32>
    %c0_i32_60 = arith.constant 0 : i32
    %132 = vector.broadcast %c0_i32_60 : i32 to vector<64x1xi32>
    %133 = arith.addi %13, %132 : vector<64x1xi32>
    %c0_i32_61 = arith.constant 0 : i32
    %134 = vector.broadcast %c0_i32_61 : i32 to vector<64x1xi32>
    %135 = arith.cmpi sge, %133, %134 : vector<64x1xi32>
    %c0_i32_62 = arith.constant 0 : i32
    %136 = vector.broadcast %c0_i32_62 : i32 to vector<64x1xi32>
    %137 = arith.addi %13, %136 : vector<64x1xi32>
    %c8_i32_63 = arith.constant 8 : i32
    %138 = vector.broadcast %c8_i32_63 : i32 to vector<64x1xi32>
    %139 = arith.cmpi slt, %137, %138 : vector<64x1xi32>
    %140 = arith.andi %135, %139 : vector<64x1xi1>
    %c1_i32_64 = arith.constant 1 : i32
    %141 = vector.broadcast %c1_i32_64 : i32 to vector<64x1xi32>
    %142 = arith.addi %15, %141 : vector<64x1xi32>
    %c0_i32_65 = arith.constant 0 : i32
    %143 = vector.broadcast %c0_i32_65 : i32 to vector<64x1xi32>
    %144 = arith.cmpi sge, %142, %143 : vector<64x1xi32>
    %145 = arith.andi %140, %144 : vector<64x1xi1>
    %c1_i32_66 = arith.constant 1 : i32
    %146 = vector.broadcast %c1_i32_66 : i32 to vector<64x1xi32>
    %147 = arith.addi %15, %146 : vector<64x1xi32>
    %c8_i32_67 = arith.constant 8 : i32
    %148 = vector.broadcast %c8_i32_67 : i32 to vector<64x1xi32>
    %149 = arith.cmpi slt, %147, %148 : vector<64x1xi32>
    %150 = arith.andi %145, %149 : vector<64x1xi1>
    %cst_68 = arith.constant 0.000000e+00 : f32
    %151 = vector.shape_cast %150 : vector<64x1xi1> to vector<64x1xi1>
    %152 = vector.broadcast %151 : vector<64x1xi1> to vector<64x8xi1>
    %153 = vector.broadcast %cst_68 : f32 to vector<64x8xf32>
    %154 = arith.select %152, %131, %153 : vector<64x8xi1>, vector<64x8xf32>
    %c5 = arith.constant 5 : index
    %c0_69 = arith.constant 0 : index
    %c0_70 = arith.constant 0 : index
    %155 = vector.load %arg5[%c5, %c0_69, %c0_70] : memref<9x8x8xf32, #tpu.memory_space<vmem>>, vector<1x8x8xf32>
    %156 = vector.shape_cast %155 : vector<1x8x8xf32> to vector<8x8xf32>
    %cst_71 = arith.constant dense<0.000000e+00> : vector<64x8xf32>
    %157 = tpu.matmul %154, %156, %cst_71 {dimension_numbers = #tpu.dot_dimension_numbers<[1], [0], [0], [1], [0, 0, 1, 1], [], []>} : vector<64x8xf32>, vector<8x8xf32>, vector<64x8xf32> -> vector<64x8xf32>
    %158 = arith.addf %130, %157 : vector<64x8xf32>
    %c57_i32 = arith.constant 57 : i32
    %159 = tpu.dynamic_rotate %11 by %c57_i32 dim 0 : vector<64x8xf32>, i32 -> vector<64x8xf32>
    %c1_i32_72 = arith.constant 1 : i32
    %160 = vector.broadcast %c1_i32_72 : i32 to vector<64x1xi32>
    %161 = arith.addi %13, %160 : vector<64x1xi32>
    %c0_i32_73 = arith.constant 0 : i32
    %162 = vector.broadcast %c0_i32_73 : i32 to vector<64x1xi32>
    %163 = arith.cmpi sge, %161, %162 : vector<64x1xi32>
    %c1_i32_74 = arith.constant 1 : i32
    %164 = vector.broadcast %c1_i32_74 : i32 to vector<64x1xi32>
    %165 = arith.addi %13, %164 : vector<64x1xi32>
    %c8_i32_75 = arith.constant 8 : i32
    %166 = vector.broadcast %c8_i32_75 : i32 to vector<64x1xi32>
    %167 = arith.cmpi slt, %165, %166 : vector<64x1xi32>
    %168 = arith.andi %163, %167 : vector<64x1xi1>
    %c-1_i32_76 = arith.constant -1 : i32
    %169 = vector.broadcast %c-1_i32_76 : i32 to vector<64x1xi32>
    %170 = arith.addi %15, %169 : vector<64x1xi32>
    %c0_i32_77 = arith.constant 0 : i32
    %171 = vector.broadcast %c0_i32_77 : i32 to vector<64x1xi32>
    %172 = arith.cmpi sge, %170, %171 : vector<64x1xi32>
    %173 = arith.andi %168, %172 : vector<64x1xi1>
    %c-1_i32_78 = arith.constant -1 : i32
    %174 = vector.broadcast %c-1_i32_78 : i32 to vector<64x1xi32>
    %175 = arith.addi %15, %174 : vector<64x1xi32>
    %c8_i32_79 = arith.constant 8 : i32
    %176 = vector.broadcast %c8_i32_79 : i32 to vector<64x1xi32>
    %177 = arith.cmpi slt, %175, %176 : vector<64x1xi32>
    %178 = arith.andi %173, %177 : vector<64x1xi1>
    %cst_80 = arith.constant 0.000000e+00 : f32
    %179 = vector.shape_cast %178 : vector<64x1xi1> to vector<64x1xi1>
    %180 = vector.broadcast %179 : vector<64x1xi1> to vector<64x8xi1>
    %181 = vector.broadcast %cst_80 : f32 to vector<64x8xf32>
    %182 = arith.select %180, %159, %181 : vector<64x8xi1>, vector<64x8xf32>
    %c6 = arith.constant 6 : index
    %c0_81 = arith.constant 0 : index
    %c0_82 = arith.constant 0 : index
    %183 = vector.load %arg5[%c6, %c0_81, %c0_82] : memref<9x8x8xf32, #tpu.memory_space<vmem>>, vector<1x8x8xf32>
    %184 = vector.shape_cast %183 : vector<1x8x8xf32> to vector<8x8xf32>
    %cst_83 = arith.constant dense<0.000000e+00> : vector<64x8xf32>
    %185 = tpu.matmul %182, %184, %cst_83 {dimension_numbers = #tpu.dot_dimension_numbers<[1], [0], [0], [1], [0, 0, 1, 1], [], []>} : vector<64x8xf32>, vector<8x8xf32>, vector<64x8xf32> -> vector<64x8xf32>
    %186 = arith.addf %158, %185 : vector<64x8xf32>
    %c56_i32 = arith.constant 56 : i32
    %187 = tpu.dynamic_rotate %11 by %c56_i32 dim 0 : vector<64x8xf32>, i32 -> vector<64x8xf32>
    %c1_i32_84 = arith.constant 1 : i32
    %188 = vector.broadcast %c1_i32_84 : i32 to vector<64x1xi32>
    %189 = arith.addi %13, %188 : vector<64x1xi32>
    %c0_i32_85 = arith.constant 0 : i32
    %190 = vector.broadcast %c0_i32_85 : i32 to vector<64x1xi32>
    %191 = arith.cmpi sge, %189, %190 : vector<64x1xi32>
    %c1_i32_86 = arith.constant 1 : i32
    %192 = vector.broadcast %c1_i32_86 : i32 to vector<64x1xi32>
    %193 = arith.addi %13, %192 : vector<64x1xi32>
    %c8_i32_87 = arith.constant 8 : i32
    %194 = vector.broadcast %c8_i32_87 : i32 to vector<64x1xi32>
    %195 = arith.cmpi slt, %193, %194 : vector<64x1xi32>
    %196 = arith.andi %191, %195 : vector<64x1xi1>
    %c0_i32_88 = arith.constant 0 : i32
    %197 = vector.broadcast %c0_i32_88 : i32 to vector<64x1xi32>
    %198 = arith.addi %15, %197 : vector<64x1xi32>
    %c0_i32_89 = arith.constant 0 : i32
    %199 = vector.broadcast %c0_i32_89 : i32 to vector<64x1xi32>
    %200 = arith.cmpi sge, %198, %199 : vector<64x1xi32>
    %201 = arith.andi %196, %200 : vector<64x1xi1>
    %c0_i32_90 = arith.constant 0 : i32
    %202 = vector.broadcast %c0_i32_90 : i32 to vector<64x1xi32>
    %203 = arith.addi %15, %202 : vector<64x1xi32>
    %c8_i32_91 = arith.constant 8 : i32
    %204 = vector.broadcast %c8_i32_91 : i32 to vector<64x1xi32>
    %205 = arith.cmpi slt, %203, %204 : vector<64x1xi32>
    %206 = arith.andi %201, %205 : vector<64x1xi1>
    %cst_92 = arith.constant 0.000000e+00 : f32
    %207 = vector.shape_cast %206 : vector<64x1xi1> to vector<64x1xi1>
    %208 = vector.broadcast %207 : vector<64x1xi1> to vector<64x8xi1>
    %209 = vector.broadcast %cst_92 : f32 to vector<64x8xf32>
    %210 = arith.select %208, %187, %209 : vector<64x8xi1>, vector<64x8xf32>
    %c7 = arith.constant 7 : index
    %c0_93 = arith.constant 0 : index
    %c0_94 = arith.constant 0 : index
    %211 = vector.load %arg5[%c7, %c0_93, %c0_94] : memref<9x8x8xf32, #tpu.memory_space<vmem>>, vector<1x8x8xf32>
    %212 = vector.shape_cast %211 : vector<1x8x8xf32> to vector<8x8xf32>
    %cst_95 = arith.constant dense<0.000000e+00> : vector<64x8xf32>
    %213 = tpu.matmul %210, %212, %cst_95 {dimension_numbers = #tpu.dot_dimension_numbers<[1], [0], [0], [1], [0, 0, 1, 1], [], []>} : vector<64x8xf32>, vector<8x8xf32>, vector<64x8xf32> -> vector<64x8xf32>
    %214 = arith.addf %186, %213 : vector<64x8xf32>
    %c55_i32 = arith.constant 55 : i32
    %215 = tpu.dynamic_rotate %11 by %c55_i32 dim 0 : vector<64x8xf32>, i32 -> vector<64x8xf32>
    %c1_i32_96 = arith.constant 1 : i32
    %216 = vector.broadcast %c1_i32_96 : i32 to vector<64x1xi32>
    %217 = arith.addi %13, %216 : vector<64x1xi32>
    %c0_i32_97 = arith.constant 0 : i32
    %218 = vector.broadcast %c0_i32_97 : i32 to vector<64x1xi32>
    %219 = arith.cmpi sge, %217, %218 : vector<64x1xi32>
    %c1_i32_98 = arith.constant 1 : i32
    %220 = vector.broadcast %c1_i32_98 : i32 to vector<64x1xi32>
    %221 = arith.addi %13, %220 : vector<64x1xi32>
    %c8_i32_99 = arith.constant 8 : i32
    %222 = vector.broadcast %c8_i32_99 : i32 to vector<64x1xi32>
    %223 = arith.cmpi slt, %221, %222 : vector<64x1xi32>
    %224 = arith.andi %219, %223 : vector<64x1xi1>
    %c1_i32_100 = arith.constant 1 : i32
    %225 = vector.broadcast %c1_i32_100 : i32 to vector<64x1xi32>
    %226 = arith.addi %15, %225 : vector<64x1xi32>
    %c0_i32_101 = arith.constant 0 : i32
    %227 = vector.broadcast %c0_i32_101 : i32 to vector<64x1xi32>
    %228 = arith.cmpi sge, %226, %227 : vector<64x1xi32>
    %229 = arith.andi %224, %228 : vector<64x1xi1>
    %c1_i32_102 = arith.constant 1 : i32
    %230 = vector.broadcast %c1_i32_102 : i32 to vector<64x1xi32>
    %231 = arith.addi %15, %230 : vector<64x1xi32>
    %c8_i32_103 = arith.constant 8 : i32
    %232 = vector.broadcast %c8_i32_103 : i32 to vector<64x1xi32>
    %233 = arith.cmpi slt, %231, %232 : vector<64x1xi32>
    %234 = arith.andi %229, %233 : vector<64x1xi1>
    %cst_104 = arith.constant 0.000000e+00 : f32
    %235 = vector.shape_cast %234 : vector<64x1xi1> to vector<64x1xi1>
    %236 = vector.broadcast %235 : vector<64x1xi1> to vector<64x8xi1>
    %237 = vector.broadcast %cst_104 : f32 to vector<64x8xf32>
    %238 = arith.select %236, %215, %237 : vector<64x8xi1>, vector<64x8xf32>
    %c8 = arith.constant 8 : index
    %c0_105 = arith.constant 0 : index
    %c0_106 = arith.constant 0 : index
    %239 = vector.load %arg5[%c8, %c0_105, %c0_106] : memref<9x8x8xf32, #tpu.memory_space<vmem>>, vector<1x8x8xf32>
    %240 = vector.shape_cast %239 : vector<1x8x8xf32> to vector<8x8xf32>
    %cst_107 = arith.constant dense<0.000000e+00> : vector<64x8xf32>
    %241 = tpu.matmul %238, %240, %cst_107 {dimension_numbers = #tpu.dot_dimension_numbers<[1], [0], [0], [1], [0, 0, 1, 1], [], []>} : vector<64x8xf32>, vector<8x8xf32>, vector<64x8xf32> -> vector<64x8xf32>
    %242 = arith.addf %214, %241 : vector<64x8xf32>
    %c0_108 = arith.constant 0 : index
    %c0_109 = arith.constant 0 : index
    %243 = vector.load %arg6[%c0_108, %c0_109] : memref<1x8xf32, #tpu.memory_space<vmem>>, vector<1x8xf32>
    %244 = vector.broadcast %243 : vector<1x8xf32> to vector<64x8xf32>
    %245 = arith.mulf %242, %244 : vector<64x8xf32>
    %c0_110 = arith.constant 0 : index
    %c0_111 = arith.constant 0 : index
    %246 = vector.load %arg7[%c0_110, %c0_111] : memref<1x8xf32, #tpu.memory_space<vmem>>, vector<1x8xf32>
    %247 = vector.broadcast %246 : vector<1x8xf32> to vector<64x8xf32>
    %248 = arith.addf %245, %247 : vector<64x8xf32>
    %cst_112 = arith.constant 0.000000e+00 : f32
    %249 = vector.broadcast %cst_112 : f32 to vector<64x8xf32>
    %250 = arith.maximumf %248, %249 : vector<64x8xf32>
    %c0_113 = arith.constant 0 : index
    %c0_114 = arith.constant 0 : index
    %251 = vector.load %arg8[%c0_113, %c0_114] : memref<8x32xf32, #tpu.memory_space<vmem>>, vector<8x32xf32>
    %cst_115 = arith.constant dense<0.000000e+00> : vector<64x32xf32>
    %252 = tpu.matmul %250, %251, %cst_115 {dimension_numbers = #tpu.dot_dimension_numbers<[1], [0], [0], [1], [0, 0, 1, 1], [], []>} : vector<64x8xf32>, vector<8x32xf32>, vector<64x32xf32> -> vector<64x32xf32>
    %c0_116 = arith.constant 0 : index
    %c0_117 = arith.constant 0 : index
    %253 = vector.load %arg9[%c0_116, %c0_117] : memref<1x32xf32, #tpu.memory_space<vmem>>, vector<1x32xf32>
    %254 = vector.broadcast %253 : vector<1x32xf32> to vector<64x32xf32>
    %255 = arith.mulf %252, %254 : vector<64x32xf32>
    %c0_118 = arith.constant 0 : index
    %c0_119 = arith.constant 0 : index
    %256 = vector.load %arg10[%c0_118, %c0_119] : memref<1x32xf32, #tpu.memory_space<vmem>>, vector<1x32xf32>
    %257 = vector.broadcast %256 : vector<1x32xf32> to vector<64x32xf32>
    %258 = arith.addf %255, %257 : vector<64x32xf32>
    %c0_120 = arith.constant 0 : index
    %c0_121 = arith.constant 0 : index
    %c0_122 = arith.constant 0 : index
    %c0_123 = arith.constant 0 : index
    %259 = vector.load %arg1[%c0_120, %c0_121, %c0_122, %c0_123] : memref<1x8x8x32xf32, #tpu.memory_space<vmem>>, vector<1x8x8x32xf32>
    %260 = vector.shape_cast %259 : vector<1x8x8x32xf32> to vector<64x32xf32>
    %261 = arith.addf %258, %260 : vector<64x32xf32>
    %cst_124 = arith.constant 0.000000e+00 : f32
    %262 = vector.broadcast %cst_124 : f32 to vector<64x32xf32>
    %263 = arith.maximumf %261, %262 : vector<64x32xf32>
    %264 = vector.shape_cast %263 : vector<64x32xf32> to vector<1x8x8x32xf32>
    %c0_125 = arith.constant 0 : index
    %c0_126 = arith.constant 0 : index
    %c0_127 = arith.constant 0 : index
    %c0_128 = arith.constant 0 : index
    %265 = vector.load %arg11[%c0_125, %c0_126, %c0_127, %c0_128] : memref<1x8x8x32xf32, #tpu.memory_space<vmem>>, vector<1x8x8x32xf32>
    tpu.vector_store %arg11[%c0_125, %c0_126, %c0_127, %c0_128], %264 {strides = array<i32>} : memref<1x8x8x32xf32, #tpu.memory_space<vmem>>, vector<1x8x8x32xf32>,
    return
  }
  func.func @transform_0(%arg0: i32) -> (i32, i32, i32, i32) {
    %c0_i32 = arith.constant 0 : i32
    %c0_i32_0 = arith.constant 0 : i32
    %c0_i32_1 = arith.constant 0 : i32
    %c0_i32_2 = arith.constant 0 : i32
    return %arg0, %c0_i32, %c0_i32_0, %c0_i32_1 : i32, i32, i32, i32
  }
  func.func @transform_1(%arg0: i32) -> (i32, i32) {
    %c0_i32 = arith.constant 0 : i32
    %c0_i32_0 = arith.constant 0 : i32
    %c0_i32_1 = arith.constant 0 : i32
    return %c0_i32, %c0_i32_0 : i32, i32
  }
  func.func @transform_2(%arg0: i32) -> (i32, i32) {
    %c0_i32 = arith.constant 0 : i32
    %c0_i32_0 = arith.constant 0 : i32
    %c0_i32_1 = arith.constant 0 : i32
    return %c0_i32, %c0_i32_0 : i32, i32
  }
  func.func @transform_3(%arg0: i32) -> (i32, i32) {
    %c0_i32 = arith.constant 0 : i32
    %c0_i32_0 = arith.constant 0 : i32
    %c0_i32_1 = arith.constant 0 : i32
    return %c0_i32, %c0_i32_0 : i32, i32
  }
  func.func @transform_4(%arg0: i32) -> (i32, i32, i32) {
    %c0_i32 = arith.constant 0 : i32
    %c0_i32_0 = arith.constant 0 : i32
    %c0_i32_1 = arith.constant 0 : i32
    %c0_i32_2 = arith.constant 0 : i32
    return %c0_i32, %c0_i32_0, %c0_i32_1 : i32, i32, i32
  }
  func.func @transform_5(%arg0: i32) -> (i32, i32) {
    %c0_i32 = arith.constant 0 : i32
    %c0_i32_0 = arith.constant 0 : i32
    %c0_i32_1 = arith.constant 0 : i32
    return %c0_i32, %c0_i32_0 : i32, i32
  }
  func.func @transform_6(%arg0: i32) -> (i32, i32) {
    %c0_i32 = arith.constant 0 : i32
    %c0_i32_0 = arith.constant 0 : i32
    %c0_i32_1 = arith.constant 0 : i32
    return %c0_i32, %c0_i32_0 : i32, i32
  }
  func.func @transform_7(%arg0: i32) -> (i32, i32) {
    %c0_i32 = arith.constant 0 : i32
    %c0_i32_0 = arith.constant 0 : i32
    %c0_i32_1 = arith.constant 0 : i32
    return %c0_i32, %c0_i32_0 : i32, i32
  }
  func.func @transform_8(%arg0: i32) -> (i32, i32) {
    %c0_i32 = arith.constant 0 : i32
    %c0_i32_0 = arith.constant 0 : i32
    %c0_i32_1 = arith.constant 0 : i32
    return %c0_i32, %c0_i32_0 : i32, i32
  }
  func.func @transform_9(%arg0: i32) -> (i32, i32) {
    %c0_i32 = arith.constant 0 : i32
    %c0_i32_0 = arith.constant 0 : i32
    %c0_i32_1 = arith.constant 0 : i32
    return %c0_i32, %c0_i32_0 : i32, i32
  }
  func.func @transform_10(%arg0: i32) -> (i32, i32, i32, i32) {
    %c0_i32 = arith.constant 0 : i32
    %c0_i32_0 = arith.constant 0 : i32
    %c0_i32_1 = arith.constant 0 : i32
    %c0_i32_2 = arith.constant 0 : i32
    return %arg0, %c0_i32, %c0_i32_0, %c0_i32_1 : i32, i32, i32, i32
  }
}

</mosaic_0001>

<llo_original>
// kernel: tpu_custom_call.1
$region0: #{tpu_custom_call.1}
  #allocation0 [shape = 'u32[]', space=smem, size = 0x4, offset = 0x4, fixed_abs, tag = 'smem constant byte address 0x4 - core index']
  #allocation1 [shape = 'u32[144,128]{1,0:T(1,128)}', space=vmem, size = 0x12000, scoped, tag = 'internal scratch']
  %s0 = inlined_call_operand.vmem [shape: f32[2,8,8,32], index: 0, kind: input, shape index: {}]
  %s1 = inlined_call_operand.vmem [shape: f32[32,8], index: 1, kind: input, shape index: {}]
  %s2 = inlined_call_operand.vmem [shape: f32[1,8], index: 2, kind: input, shape index: {}]
  %s3 = inlined_call_operand.vmem [shape: f32[1,8], index: 3, kind: input, shape index: {}]
  %s4 = inlined_call_operand.vmem [shape: f32[9,8,8], index: 4, kind: input, shape index: {}]
  %s5 = inlined_call_operand.vmem [shape: f32[1,8], index: 5, kind: input, shape index: {}]
  %s6 = inlined_call_operand.vmem [shape: f32[1,8], index: 6, kind: input, shape index: {}]
  %s7 = inlined_call_operand.vmem [shape: f32[8,32], index: 7, kind: input, shape index: {}]
  %s8 = inlined_call_operand.vmem [shape: f32[1,32], index: 8, kind: input, shape index: {}]
  %s9 = inlined_call_operand.vmem [shape: f32[1,32], index: 9, kind: input, shape index: {}]
  %s10 = inlined_call_operand.hbm [shape: f32[2,8,8,32], index: 10, kind: output, shape index: {}]
  %s11 = sld [smem:[#allocation0]]
  $region73: #{tpu_custom_call.1} parent=0
    _
  %s13 = ssub.s32 1, %s11
  %s14 = scalar_select 0, %s13, %s11
  $region1: #{tpu_custom_call.1} parent=0
    #allocation2 [shape = 'u8[65536]{0}', space=vmem, size = 0x10000, scoped, tag = 'output window, operand 0']
    #allocation3 [shape = 's32[2]{0}', space=sflag, size = 0x8, scoped, tag = 'scoped memory for tpu_custom_call.1']
    %15 = vsyncpa [#allocation3], 0
    %s16 = scalar_lea.sflag [#allocation3], 1
    %17 = vsyncpa %s16, 0
    loop: start=0, step=1, limit=4
    $region2: #{tpu_custom_call.1} parent=1 // loop_pre_header
      _
    $region3: #{tpu_custom_call.1} parent=1 // loop_header
      %s19 = sphi 0, %s23
      %p20 = scmp.ge.s32.totalorder %s19, 4
      %s29 = sphi 0, %s31
      %s32 = sphi 0, %s29
      %s33 = sphi 0, %s32
      %s49 = sphi 0, %s33
      %s53 = sphi 0, %s53
      %s55 = sphi 0, %s53
      %s56 = sphi 0, %s55
      %s70 = sphi 0, %s56
      %s74 = sphi 0, %s74
      %s76 = sphi 0, %s74
      %s77 = sphi 0, %s76
      %s91 = sphi 0, %s77
      %s95 = sphi 0, %s95
      %s97 = sphi 0, %s95
      %s98 = sphi 0, %s97
      %s112 = sphi 0, %s98
      %s116 = sphi 0, %s116
      %s118 = sphi 0, %s116
      %s119 = sphi 0, %s118
      %s133 = sphi 0, %s119
      %s137 = sphi 0, %s137
      %s139 = sphi 0, %s137
      %s140 = sphi 0, %s139
      %s154 = sphi 0, %s140
      %s158 = sphi 0, %s158
      %s160 = sphi 0, %s158
      %s161 = sphi 0, %s160
      %s175 = sphi 0, %s161
      %s179 = sphi 0, %s179
      %s181 = sphi 0, %s179
      %s182 = sphi 0, %s181
      %s196 = sphi 0, %s182
      %s200 = sphi 0, %s200
      %s202 = sphi 0, %s200
      %s203 = sphi 0, %s202
      %s217 = sphi 0, %s203
      %s221 = sphi 0, %s221
      %s223 = sphi 0, %s221
      %s224 = sphi 0, %s223
      %s238 = sphi 0, %s224
      %s244 = sphi 0, %s246
      %s247 = sphi 0, %s244
      %s248 = sphi 0, %s247
      %s264 = sphi 0, %s248
    $region4: #{tpu_custom_call.1} parent=1 // loop_header_branch
      %22 = sbr.rel (%p20) target = $region8
    $region5: #{tpu_custom_call.1} parent=1 // loop_body
      %s24 = ssub.s32 %s19, 1
      %s25 = ssub.s32 %s19, 2
      %s26 = sadd.s32 %s19, 1
      %s27 = ssub.s32 %s19, %s26
      %p28 = scmp.eq.s32.totalorder %s27, 0
      %s30 = sadd.s32 %s29, 1
      %s31 = scalar_select %p28, %s29, %s30
      %p34 = pneg %p28
      %p35 = scmp.eq.s32.totalorder %s19, 1
      %p36 = por %p34, %p35
      %p37 = scmp.ne.s32.totalorder %s29, %s32
      %p38 = scmp.eq.s32.totalorder %s19, 0
      %p39 = por %p37, %p38
      %p40 = scmp.ne.s32.totalorder %s29, %s32
      %p41 = scmp.eq.s32.totalorder %s24, 1
      %p42 = por %p40, %p41
      %p43 = scmp.ne.s32.totalorder %s32, %s33
      %p44 = scmp.eq.s32.totalorder %s24, 0
      %p45 = por %p43, %p44
      %p46 = scmp.ne.s32.totalorder %s32, %s33
      %p47 = scmp.eq.s32.totalorder %s25, 1
      %p48 = por %p46, %p47
      %p50 = scmp.ne.s32.totalorder %s33, %s49
      %p51 = scmp.eq.s32.totalorder %s25, 0
      %p52 = por %p50, %p51
      %s54 = sadd.s32 %s53, 1
      %p57 = scmp.eq.s32.totalorder %s19, 1
      %p58 = scmp.ne.s32.totalorder %s53, %s55
      %p59 = scmp.eq.s32.totalorder %s19, 0
      %p60 = por %p58, %p59
      %p61 = scmp.ne.s32.totalorder %s53, %s55
      %p62 = scmp.eq.s32.totalorder %s24, 1
      %p63 = por %p61, %p62
      %p64 = scmp.ne.s32.totalorder %s55, %s56
      %p65 = scmp.eq.s32.totalorder %s24, 0
      %p66 = por %p64, %p65
      %p67 = scmp.ne.s32.totalorder %s55, %s56
      %p68 = scmp.eq.s32.totalorder %s25, 1
      %p69 = por %p67, %p68
      %p71 = scmp.ne.s32.totalorder %s56, %s70
      %p72 = scmp.eq.s32.totalorder %s25, 0
      %p73 = por %p71, %p72
      %s75 = sadd.s32 %s74, 1
      %p78 = scmp.eq.s32.totalorder %s19, 1
      %p79 = scmp.ne.s32.totalorder %s74, %s76
      %p80 = scmp.eq.s32.totalorder %s19, 0
      %p81 = por %p79, %p80
      %p82 = scmp.ne.s32.totalorder %s74, %s76
      %p83 = scmp.eq.s32.totalorder %s24, 1
      %p84 = por %p82, %p83
      %p85 = scmp.ne.s32.totalorder %s76, %s77
      %p86 = scmp.eq.s32.totalorder %s24, 0
      %p87 = por %p85, %p86
      %p88 = scmp.ne.s32.totalorder %s76, %s77
      %p89 = scmp.eq.s32.totalorder %s25, 1
      %p90 = por %p88, %p89
      %p92 = scmp.ne.s32.totalorder %s77, %s91
      %p93 = scmp.eq.s32.totalorder %s25, 0
      %p94 = por %p92, %p93
      %s96 = sadd.s32 %s95, 1
      %p99 = scmp.eq.s32.totalorder %s19, 1
      %p100 = scmp.ne.s32.totalorder %s95, %s97
      %p101 = scmp.eq.s32.totalorder %s19, 0
      %p102 = por %p100, %p101
      %p103 = scmp.ne.s32.totalorder %s95, %s97
      %p104 = scmp.eq.s32.totalorder %s24, 1
      %p105 = por %p103, %p104
      %p106 = scmp.ne.s32.totalorder %s97, %s98
      %p107 = scmp.eq.s32.totalorder %s24, 0
      %p108 = por %p106, %p107
      %p109 = scmp.ne.s32.totalorder %s97, %s98
      %p110 = scmp.eq.s32.totalorder %s25, 1
      %p111 = por %p109, %p110
      %p113 = scmp.ne.s32.totalorder %s98, %s112
      %p114 = scmp.eq.s32.totalorder %s25, 0
      %p115 = por %p113, %p114
      %s117 = sadd.s32 %s116, 1
      %p120 = scmp.eq.s32.totalorder %s19, 1
      %p121 = scmp.ne.s32.totalorder %s116, %s118
      %p122 = scmp.eq.s32.totalorder %s19, 0
      %p123 = por %p121, %p122
      %p124 = scmp.ne.s32.totalorder %s116, %s118
      %p125 = scmp.eq.s32.totalorder %s24, 1
      %p126 = por %p124, %p125
      %p127 = scmp.ne.s32.totalorder %s118, %s119
      %p128 = scmp.eq.s32.totalorder %s24, 0
      %p129 = por %p127, %p128
      %p130 = scmp.ne.s32.totalorder %s118, %s119
      %p131 = scmp.eq.s32.totalorder %s25, 1
      %p132 = por %p130, %p131
      %p134 = scmp.ne.s32.totalorder %s119, %s133
      %p135 = scmp.eq.s32.totalorder %s25, 0
      %p136 = por %p134, %p135
      %s138 = sadd.s32 %s137, 1
      %p141 = scmp.eq.s32.totalorder %s19, 1
      %p142 = scmp.ne.s32.totalorder %s137, %s139
      %p143 = scmp.eq.s32.totalorder %s19, 0
      %p144 = por %p142, %p143
      %p145 = scmp.ne.s32.totalorder %s137, %s139
      %p146 = scmp.eq.s32.totalorder %s24, 1
      %p147 = por %p145, %p146
      %p148 = scmp.ne.s32.totalorder %s139, %s140
      %p149 = scmp.eq.s32.totalorder %s24, 0
      %p150 = por %p148, %p149
      %p151 = scmp.ne.s32.totalorder %s139, %s140
      %p152 = scmp.eq.s32.totalorder %s25, 1
      %p153 = por %p151, %p152
      %p155 = scmp.ne.s32.totalorder %s140, %s154
      %p156 = scmp.eq.s32.totalorder %s25, 0
      %p157 = por %p155, %p156
      %s159 = sadd.s32 %s158, 1
      %p162 = scmp.eq.s32.totalorder %s19, 1
      %p163 = scmp.ne.s32.totalorder %s158, %s160
      %p164 = scmp.eq.s32.totalorder %s19, 0
      %p165 = por %p163, %p164
      %p166 = scmp.ne.s32.totalorder %s158, %s160
      %p167 = scmp.eq.s32.totalorder %s24, 1
      %p168 = por %p166, %p167
      %p169 = scmp.ne.s32.totalorder %s160, %s161
      %p170 = scmp.eq.s32.totalorder %s24, 0
      %p171 = por %p169, %p170
      %p172 = scmp.ne.s32.totalorder %s160, %s161
      %p173 = scmp.eq.s32.totalorder %s25, 1
      %p174 = por %p172, %p173
      %p176 = scmp.ne.s32.totalorder %s161, %s175
      %p177 = scmp.eq.s32.totalorder %s25, 0
      %p178 = por %p176, %p177
      %s180 = sadd.s32 %s179, 1
      %p183 = scmp.eq.s32.totalorder %s19, 1
      %p184 = scmp.ne.s32.totalorder %s179, %s181
      %p185 = scmp.eq.s32.totalorder %s19, 0
      %p186 = por %p184, %p185
      %p187 = scmp.ne.s32.totalorder %s179, %s181
      %p188 = scmp.eq.s32.totalorder %s24, 1
      %p189 = por %p187, %p188
      %p190 = scmp.ne.s32.totalorder %s181, %s182
      %p191 = scmp.eq.s32.totalorder %s24, 0
      %p192 = por %p190, %p191
      %p193 = scmp.ne.s32.totalorder %s181, %s182
      %p194 = scmp.eq.s32.totalorder %s25, 1
      %p195 = por %p193, %p194
      %p197 = scmp.ne.s32.totalorder %s182, %s196
      %p198 = scmp.eq.s32.totalorder %s25, 0
      %p199 = por %p197, %p198
      %s201 = sadd.s32 %s200, 1
      %p204 = scmp.eq.s32.totalorder %s19, 1
      %p205 = scmp.ne.s32.totalorder %s200, %s202
      %p206 = scmp.eq.s32.totalorder %s19, 0
      %p207 = por %p205, %p206
      %p208 = scmp.ne.s32.totalorder %s200, %s202
      %p209 = scmp.eq.s32.totalorder %s24, 1
      %p210 = por %p208, %p209
      %p211 = scmp.ne.s32.totalorder %s202, %s203
      %p212 = scmp.eq.s32.totalorder %s24, 0
      %p213 = por %p211, %p212
      %p214 = scmp.ne.s32.totalorder %s202, %s203
      %p215 = scmp.eq.s32.totalorder %s25, 1
      %p216 = por %p214, %p215
      %p218 = scmp.ne.s32.totalorder %s203, %s217
      %p219 = scmp.eq.s32.totalorder %s25, 0
      %p220 = por %p218, %p219
      %s222 = sadd.s32 %s221, 1
      %p225 = scmp.eq.s32.totalorder %s19, 1
      %p226 = scmp.ne.s32.totalorder %s221, %s223
      %p227 = scmp.eq.s32.totalorder %s19, 0
      %p228 = por %p226, %p227
      %p229 = scmp.ne.s32.totalorder %s221, %s223
      %p230 = scmp.eq.s32.totalorder %s24, 1
      %p231 = por %p229, %p230
      %p232 = scmp.ne.s32.totalorder %s223, %s224
      %p233 = scmp.eq.s32.totalorder %s24, 0
      %p234 = por %p232, %p233
      %p235 = scmp.ne.s32.totalorder %s223, %s224
      %p236 = scmp.eq.s32.totalorder %s25, 1
      %p237 = por %p235, %p236
      %p239 = scmp.ne.s32.totalorder %s224, %s238
      %p240 = scmp.eq.s32.totalorder %s25, 0
      %p241 = por %p239, %p240
      %s242 = ssub.s32 %s19, %s26
      %p243 = scmp.eq.s32.totalorder %s242, 0
      %s245 = sadd.s32 %s244, 1
      %s246 = scalar_select %p243, %s244, %s245
      %p249 = pneg %p243
      %p250 = scmp.eq.s32.totalorder %s19, 1
      %p251 = por %p249, %p250
      %p252 = scmp.ne.s32.totalorder %s244, %s247
      %p253 = scmp.eq.s32.totalorder %s19, 0
      %p254 = por %p252, %p253
      %p255 = scmp.ne.s32.totalorder %s244, %s247
      %p256 = scmp.eq.s32.totalorder %s24, 1
      %p257 = por %p255, %p256
      %p258 = scmp.ne.s32.totalorder %s247, %s248
      %p259 = scmp.eq.s32.totalorder %s24, 0
      %p260 = por %p258, %p259
      %p261 = scmp.ne.s32.totalorder %s247, %s248
      %p262 = scmp.eq.s32.totalorder %s25, 1
      %p263 = por %p261, %p262
      %p265 = scmp.ne.s32.totalorder %s248, %s264
      %p266 = scmp.eq.s32.totalorder %s25, 0
      %p267 = por %p265, %p266
      %p268 = scmp.le.s32.totalorder 1, %s19
      %p269 = scmp.lt.s32.totalorder %s19, 3
      %p270 = pnand %p268, %p269
      %p271 = pneg %p270
      // Predicated region
      $region9: #{tpu_custom_call.1} parent=5 // pred_check
        _
      $region10: #{tpu_custom_call.1} parent=5 // pred_check_branch
        %273 = sbr.rel (%p270) target = $region12
      $region11: #{tpu_custom_call.1} parent=5 // pred_region
        %s274 = ssub.s32 %s19, 1
        // Predicated region
        $region13: #{tpu_custom_call.1} parent=11 // pred_check
          %p275 = pneg %p66
        $region14: #{tpu_custom_call.1} parent=11 // pred_check_branch
          %277 = sbr.rel (%p275) target = $region16
        $region15: #{tpu_custom_call.1} parent=11 // pred_region
          _
        $region16: #{tpu_custom_call.1} parent=11 // pred_fallthru
          _
        // Predicated region
        $region17: #{tpu_custom_call.1} parent=11 // pred_check
          %p278 = pneg %p87
        $region18: #{tpu_custom_call.1} parent=11 // pred_check_branch
          %280 = sbr.rel (%p278) target = $region20
        $region19: #{tpu_custom_call.1} parent=11 // pred_region
          _
        $region20: #{tpu_custom_call.1} parent=11 // pred_fallthru
          _
        // Predicated region
        $region21: #{tpu_custom_call.1} parent=11 // pred_check
          %p281 = pneg %p108
        $region22: #{tpu_custom_call.1} parent=11 // pred_check_branch
          %283 = sbr.rel (%p281) target = $region24
        $region23: #{tpu_custom_call.1} parent=11 // pred_region
          _
        $region24: #{tpu_custom_call.1} parent=11 // pred_fallthru
          _
        // Predicated region
        $region25: #{tpu_custom_call.1} parent=11 // pred_check
          %p284 = pneg %p129
        $region26: #{tpu_custom_call.1} parent=11 // pred_check_branch
          %286 = sbr.rel (%p284) target = $region28
        $region27: #{tpu_custom_call.1} parent=11 // pred_region
          _
        $region28: #{tpu_custom_call.1} parent=11 // pred_fallthru
          _
        // Predicated region
        $region29: #{tpu_custom_call.1} parent=11 // pred_check
          %p287 = pneg %p150
        $region30: #{tpu_custom_call.1} parent=11 // pred_check_branch
          %289 = sbr.rel (%p287) target = $region32
        $region31: #{tpu_custom_call.1} parent=11 // pred_region
          _
        $region32: #{tpu_custom_call.1} parent=11 // pred_fallthru
          _
        // Predicated region
        $region33: #{tpu_custom_call.1} parent=11 // pred_check
          %p290 = pneg %p171
        $region34: #{tpu_custom_call.1} parent=11 // pred_check_branch
          %292 = sbr.rel (%p290) target = $region36
        $region35: #{tpu_custom_call.1} parent=11 // pred_region
          _
        $region36: #{tpu_custom_call.1} parent=11 // pred_fallthru
          _
        // Predicated region
        $region37: #{tpu_custom_call.1} parent=11 // pred_check
          %p293 = pneg %p192
        $region38: #{tpu_custom_call.1} parent=11 // pred_check_branch
          %295 = sbr.rel (%p293) target = $region40
        $region39: #{tpu_custom_call.1} parent=11 // pred_region
          _
        $region40: #{tpu_custom_call.1} parent=11 // pred_fallthru
          _
        // Predicated region
        $region41: #{tpu_custom_call.1} parent=11 // pred_check
          %p296 = pneg %p213
        $region42: #{tpu_custom_call.1} parent=11 // pred_check_branch
          %298 = sbr.rel (%p296) target = $region44
        $region43: #{tpu_custom_call.1} parent=11 // pred_region
          _
        $region44: #{tpu_custom_call.1} parent=11 // pred_fallthru
          _
        // Predicated region
        $region45: #{tpu_custom_call.1} parent=11 // pred_check
          %p299 = pneg %p234
        $region46: #{tpu_custom_call.1} parent=11 // pred_check_branch
          %301 = sbr.rel (%p299) target = $region48
        $region47: #{tpu_custom_call.1} parent=11 // pred_region
          _
        $region48: #{tpu_custom_call.1} parent=11 // pred_fallthru
          _
      $region12: #{tpu_custom_call.1} parent=5 // pred_fallthru
        _
      %p302 = scmp.lt.s32.totalorder %s19, 2
      // Predicated region
      $region49: #{tpu_custom_call.1} parent=5 // pred_check
        %p303 = pneg %p302
      $region50: #{tpu_custom_call.1} parent=5 // pred_check_branch
        %305 = sbr.rel (%p303) target = $region52
      $region51: #{tpu_custom_call.1} parent=5 // pred_region
        // Predicated region
        $region53: #{tpu_custom_call.1} parent=51 // pred_check
          %p306 = pneg %p39
        $region54: #{tpu_custom_call.1} parent=51 // pred_check_branch
          %308 = sbr.rel (%p306) target = $region56
        $region55: #{tpu_custom_call.1} parent=51 // pred_region
          %p309 = scmp.lt.s32.totalorder %s19, 1
          %s310 = scalar_select %p309, %s19, 1
          %s311 = smul.addr %s310, 8
          %s312 = smul.addr %s311, 8
          %s313 = scalar_lea.vmem %s0, %s312
        $region56: #{tpu_custom_call.1} parent=51 // pred_fallthru
          _
      $region52: #{tpu_custom_call.1} parent=5 // pred_fallthru
        _
      %p314 = scmp.le.s32.totalorder 1, %s19
      %p315 = scmp.lt.s32.totalorder %s19, 3
      %p316 = pnand %p314, %p315
      %p317 = pneg %p316
      // Predicated region
      $region57: #{tpu_custom_call.1} parent=5 // pred_check
        _
      $region58: #{tpu_custom_call.1} parent=5 // pred_check_branch
        %319 = sbr.rel (%p316) target = $region60
      $region59: #{tpu_custom_call.1} parent=5 // pred_region
        %s320 = ssub.s32 %s19, 1
        %p321 = scmp.lt.s32.totalorder %s24, 1
        %s322 = scalar_select %p321, %s24, 1
        %s323 = smul.addr %s322, 8
        %s324 = smul.addr %s323, 8
        %s325 = scalar_lea.vmem %s0, %s324
        %p326 = pneg %p45
        %p327 = pneg %p42
        %p328 = pneg %p66
        %p329 = pneg %p63
        %p330 = pneg %p87
        %p331 = pneg %p84
        %p332 = pneg %p108
        %p333 = pneg %p105
        %p334 = pneg %p129
        %p335 = pneg %p126
        %p336 = pneg %p150
        %p337 = pneg %p147
        %p338 = pneg %p171
        %p339 = pneg %p168
        %p340 = pneg %p192
        %p341 = pneg %p189
        %p342 = pneg %p213
        %p343 = pneg %p210
        %p344 = pneg %p234
        %p345 = pneg %p231
        %p346 = pneg %p260
        %p347 = pneg %p257
        %s348 = sand.u32 %s247, 1
        %s349 = scalar_lea.sflag [#allocation3], %s348
        %s350 = sand.u32 %s247, 1
        %s351 = smul.addr %s350, 64
        %s352 = scalar_lea.vmem [#allocation2], %s351
        %p353 = scmp.lt.s32.totalorder %s24, 1
        %s354 = scalar_select %p353, %s24, 1
        %s355 = smul.addr %s354, 8
        %s356 = smul.addr %s355, 8
        %s357 = scalar_lea.vmem %s0, %s356
        %v358 = vld [vmem:[%s357] sm:$0xff]
        %v359 = vld [vmem:[%s357 + $0x8] sm:$0xff]
        %v360 = vld [vmem:[%s357 + $0x10] sm:$0xff]
        %v361 = vld [vmem:[%s357 + $0x18] sm:$0xff]
        %v362 = vld [vmem:[%s357 + $0x20] sm:$0xff]
        %v363 = vld [vmem:[%s357 + $0x28] sm:$0xff]
        %v364 = vld [vmem:[%s357 + $0x30] sm:$0xff]
        %v365 = vld [vmem:[%s357 + $0x38] sm:$0xff]
        %v366 = vld [vmem:[%s1] sm:$0xff]
        %v367 = vld [vmem:[%s1 + $0x8] sm:$0xff]
        %v368 = vld [vmem:[%s1 + $0x10] sm:$0xff]
        %v369 = vld [vmem:[%s1 + $0x18] sm:$0xff]
        %vm370 = vcmask 261120
        %v372 = vsel %vm370, %v358, 0
        %v375 = vsel %vm370, %v359, 0
        %v378 = vsel %vm370, %v360, 0
        %v381 = vsel %vm370, %v361, 0
        %v384 = vsel %vm370, %v362, 0
        %v387 = vsel %vm370, %v363, 0
        %v390 = vsel %vm370, %v364, 0
        %v393 = vsel %vm370, %v365, 0
        %395 = vmatprep.subr.mxu0 0.0
        %396 = vmatpush1.msra.mxu0 %v366
        %397 = vmatprep.subr.mxu0 0.0
        %398 = vmatpush1.msra.mxu0 %v367
        %399 = vmatprep.subr.mxu0 0.0
        %400 = vmatpush1.msra.mxu0 %v368
        %401 = vmatprep.subr.mxu0 0.0
        %402 = vmatpush1.msra.mxu0 %v369
        %403 = vmatprep.subr.mxu0 0.0
        %404 = vmatpush1.msra.mxu0 0.0
        %405 = vmatprep.subr.mxu0 0.0
        %406 = vmatpush1.msra.mxu0 0.0
        %407 = vmatprep.subr.mxu0 0.0
        %408 = vmatpush1.msra.mxu0 0.0
        %409 = vmatprep.subr.mxu0 0.0
        %410 = vmatpush1.msra.mxu0 0.0
        %411 = vmatprep.subr.mxu0 0.0
        %412 = vmatpush1.msra.mxu0 0.0
        %413 = vmatprep.subr.mxu0 0.0
        %414 = vmatpush1.msra.mxu0 0.0
        %415 = vmatprep.subr.mxu0 0.0
        %416 = vmatpush1.msra.mxu0 0.0
        %417 = vmatprep.subr.mxu0 0.0
        %418 = vmatpush1.msra.mxu0 0.0
        %419 = vmatprep.subr.mxu0 0.0
        %420 = vmatpush1.msra.mxu0 0.0
        %421 = vmatprep.subr.mxu0 0.0
        %422 = vmatpush1.msra.mxu0 0.0
        %423 = vmatprep.subr.mxu0 0.0
        %424 = vmatpush1.msra.mxu0 0.0
        %425 = vmatprep.subr.mxu0 0.0
        %426 = vmatpush1.msra.mxu0 0.0
        %427 = vmatprep.subr.mxu0 0.0
        %428 = vmatpush1.msra.mxu0 0.0
        %429 = vmatprep.subr.mxu0 0.0
        %430 = vmatpush1.msra.mxu0 0.0
        %431 = vmatprep.subr.mxu0 0.0
        %432 = vmatpush1.msra.mxu0 0.0
        %433 = vmatprep.subr.mxu0 0.0
        %434 = vmatpush1.msra.mxu0 0.0
        %435 = vmatprep.subr.mxu0 0.0
        %436 = vmatpush1.msra.mxu0 0.0
        %437 = vmatprep.subr.mxu0 0.0
        %438 = vmatpush1.msra.mxu0 0.0
        %439 = vmatprep.subr.mxu0 0.0
        %440 = vmatpush1.msra.mxu0 0.0
        %441 = vmatprep.subr.mxu0 0.0
        %442 = vmatpush1.msra.mxu0 0.0
        %443 = vmatprep.subr.mxu0 0.0
        %444 = vmatpush1.msra.mxu0 0.0
        %445 = vmatprep.subr.mxu0 0.0
        %446 = vmatpush1.msra.mxu0 0.0
        %447 = vmatprep.subr.mxu0 0.0
        %448 = vmatpush1.msra.mxu0 0.0
        %449 = vmatprep.subr.mxu0 0.0
        %450 = vmatpush1.msra.mxu0 0.0
        %451 = vmatprep.subr.mxu0 0.0
        %452 = vmatpush1.msra.mxu0 0.0
        %453 = vmatprep.subr.mxu0 0.0
        %454 = vmatpush1.msra.mxu0 0.0
        %455 = vmatprep.subr.mxu0 0.0
        %456 = vmatpush1.msra.mxu0 0.0
        %457 = vmatprep.subr.mxu0 0.0
        %458 = vmatpush1.msra.mxu0 0.0
        %459 = vmatprep.mubr.f32.mxu0 0.0
        %460 = vmatmul.mubr.f32.gmra.mrb[0].mxu0 %v372
        %v461 = vpop.f32.mrb[0].mxu0
        %v462 = vadd.f32 0.0, %v461
        %v463 = vpop.f32.mrb[0].mxu0
        %464 = vmatprep.mubr.f32.mxu0 0.0
        %465 = vmatmul.mubr.f32.gmra.mrb[0].mxu0 %v375
        %v466 = vpop.f32.mrb[0].mxu0
        %v467 = vadd.f32 0.0, %v466
        %v468 = vpop.f32.mrb[0].mxu0
        %469 = vmatprep.mubr.f32.mxu0 0.0
        %470 = vmatmul.mubr.f32.gmra.mrb[0].mxu0 %v378
        %v471 = vpop.f32.mrb[0].mxu0
        %v472 = vadd.f32 0.0, %v471
        %v473 = vpop.f32.mrb[0].mxu0
        %474 = vmatprep.mubr.f32.mxu0 0.0
        %475 = vmatmul.mubr.f32.gmra.mrb[0].mxu0 %v381
        %v476 = vpop.f32.mrb[0].mxu0
        %v477 = vadd.f32 0.0, %v476
        %v478 = vpop.f32.mrb[0].mxu0
        %479 = vmatprep.mubr.f32.mxu0 0.0
        %480 = vmatmul.mubr.f32.gmra.mrb[0].mxu0 %v384
        %v481 = vpop.f32.mrb[0].mxu0
        %v482 = vadd.f32 0.0, %v481
        %v483 = vpop.f32.mrb[0].mxu0
        %484 = vmatprep.mubr.f32.mxu0 0.0
        %485 = vmatmul.mubr.f32.gmra.mrb[0].mxu0 %v387
        %v486 = vpop.f32.mrb[0].mxu0
        %v487 = vadd.f32 0.0, %v486
        %v488 = vpop.f32.mrb[0].mxu0
        %489 = vmatprep.mubr.f32.mxu0 0.0
        %490 = vmatmul.mubr.f32.gmra.mrb[0].mxu0 %v390
        %v491 = vpop.f32.mrb[0].mxu0
        %v492 = vadd.f32 0.0, %v491
        %v493 = vpop.f32.mrb[0].mxu0
        %494 = vmatprep.mubr.f32.mxu0 0.0
        %495 = vmatmul.mubr.f32.gmra.mrb[0].mxu0 %v393
        %v496 = vpop.f32.mrb[0].mxu0
        %v497 = vadd.f32 0.0, %v496
        %v498 = vpop.f32.mrb[0].mxu0
        %499 = vdwg.mxu0
        %v500 = vld [vmem:[%s2] sm:$0x1]
        %v502 = vlaneseq
        %v503 = vshrl.u32 %v502, 7
        %v504 = vsub.s32 0, %v503
        %v505 = vrot.slane %v500, %v504
        %v507 = vmul.f32 %v462, %v505
        %v508 = vmul.f32 %v467, %v505
        %v509 = vmul.f32 %v472, %v505
        %v510 = vmul.f32 %v477, %v505
        %v511 = vmul.f32 %v482, %v505
        %v512 = vmul.f32 %v487, %v505
        %v513 = vmul.f32 %v492, %v505
        %v514 = vmul.f32 %v497, %v505
        %v515 = vld [vmem:[%s3] sm:$0x1]
        %v517 = vlaneseq
        %v518 = vshrl.u32 %v517, 7
        %v519 = vsub.s32 0, %v518
        %v520 = vrot.slane %v515, %v519
        %v522 = vadd.f32 %v507, %v520
        %v523 = vadd.f32 %v508, %v520
        %v524 = vadd.f32 %v509, %v520
        %v525 = vadd.f32 %v510, %v520
        %v526 = vadd.f32 %v511, %v520
        %v527 = vadd.f32 %v512, %v520
        %v528 = vadd.f32 %v513, %v520
        %v529 = vadd.f32 %v514, %v520
        %v530 = vmax.f32 %v522, 0.0
        %v531 = vmax.f32 %v523, 0.0
        %v532 = vmax.f32 %v524, 0.0
        %v533 = vmax.f32 %v525, 0.0
        %v534 = vmax.f32 %v526, 0.0
        %v535 = vmax.f32 %v527, 0.0
        %v536 = vmax.f32 %v528, 0.0
        %v537 = vmax.f32 %v529, 0.0
        %v538 = vlaneseq
        %v539 = vshrl.u32 %v538, 7
        %v540 = vrot.slane %v530, 7
        %v541 = vrot.slane %v531, 7
        %v542 = vrot.slane %v532, 7
        %v543 = vrot.slane %v533, 7
        %v544 = vrot.slane %v534, 7
        %v545 = vrot.slane %v535, 7
        %v546 = vrot.slane %v536, 7
        %v547 = vrot.slane %v537, 7
        %vm548 = vcmp.lt.s32.totalorder %v539, 1
        %v549 = vsel %vm548, %v545, %v546
        %v550 = vsel %vm548, %v544, %v545
        %v551 = vsel %vm548, %v543, %v544
        %v552 = vsel %vm548, %v542, %v543
        %v553 = vsel %vm548, %v541, %v542
        %v554 = vsel %vm548, %v540, %v541
        %v555 = vsel %vm548, %v547, %v540
        %v556 = vadd.s32 %v539, 4294967295
        %vm557 = vcmp.ge.s32.totalorder %v556, 0
        %vm558 = vcmp.lt.s32.totalorder %v556, 8
        %vm559 = vmand %vm557, %vm558
        %v560 = vsel %vm559, 1, 0
        %vm561 = vcmp.eq.s32.totalorder %v560, 1
        %v562 = vsel %vm561, %v555, 0.0
        %v563 = vsel %vm561, %v554, 0.0
        %v564 = vsel %vm561, %v553, 0.0
        %v565 = vsel %vm561, %v552, 0.0
        %v566 = vsel %vm561, %v551, 0.0
        %v567 = vsel %vm561, %v550, 0.0
        %v568 = vsel %vm561, %v549, 0.0
        %v569 = vld [vmem:[%s4] sm:$0xff]
        %vm570 = vcmp.ge.s32.totalorder %v539, 0
        %vm571 = vcmp.lt.s32.totalorder %v539, 8
        %vm572 = vmand %vm570, %vm571
        %v573 = vsel %vm572, 1, 0
        %vm574 = vcmp.eq.s32.totalorder %v573, 1
        %v575 = vsel %vm574, %v530, 0.0
        %v576 = vsel %vm574, %v531, 0.0
        %v577 = vsel %vm574, %v532, 0.0
        %v578 = vsel %vm574, %v533, 0.0
        %v579 = vsel %vm574, %v534, 0.0
        %v580 = vsel %vm574, %v535, 0.0
        %v581 = vsel %vm574, %v536, 0.0
        %s582 = scalar_lea.vmem %s4, 8
        %v583 = vld [vmem:[%s582] sm:$0xff]
        %vm584 = vcmask 64512
        %v586 = vsel %vm584, 0.0, 0
        %v589 = vsel %vm584, %v575, 0
        %v592 = vsel %vm584, %v576, 0
        %v595 = vsel %vm584, %v577, 0
        %v598 = vsel %vm584, %v578, 0
        %v601 = vsel %vm584, %v579, 0
        %v604 = vsel %vm584, %v580, 0
        %v607 = vsel %vm584, %v581, 0
        %609 = vmatprep.subr.mxu0 0.0
        %610 = vmatpush1.msra.mxu0 %v583
        %611 = vmatprep.subr.mxu0 0.0
        %612 = vmatpush1.msra.mxu0 0.0
        %613 = vmatprep.subr.mxu0 0.0
        %614 = vmatpush1.msra.mxu0 0.0
        %615 = vmatprep.subr.mxu0 0.0
        %616 = vmatpush1.msra.mxu0 0.0
        %617 = vmatprep.subr.mxu0 0.0
        %618 = vmatpush1.msra.mxu0 0.0
        %619 = vmatprep.subr.mxu0 0.0
        %620 = vmatpush1.msra.mxu0 0.0
        %621 = vmatprep.subr.mxu0 0.0
        %622 = vmatpush1.msra.mxu0 0.0
        %623 = vmatprep.subr.mxu0 0.0
        %624 = vmatpush1.msra.mxu0 0.0
        %625 = vmatprep.subr.mxu0 0.0
        %626 = vmatpush1.msra.mxu0 0.0
        %627 = vmatprep.subr.mxu0 0.0
        %628 = vmatpush1.msra.mxu0 0.0
        %629 = vmatprep.subr.mxu0 0.0
        %630 = vmatpush1.msra.mxu0 0.0
        %631 = vmatprep.subr.mxu0 0.0
        %632 = vmatpush1.msra.mxu0 0.0
        %633 = vmatprep.subr.mxu0 0.0
        %634 = vmatpush1.msra.mxu0 0.0
        %635 = vmatprep.subr.mxu0 0.0
        %636 = vmatpush1.msra.mxu0 0.0
        %637 = vmatprep.subr.mxu0 0.0
        %638 = vmatpush1.msra.mxu0 0.0
        %639 = vmatprep.subr.mxu0 0.0
        %640 = vmatpush1.msra.mxu0 0.0
        %641 = vmatprep.subr.mxu0 0.0
        %642 = vmatpush1.msra.mxu0 0.0
        %643 = vmatprep.subr.mxu0 0.0
        %644 = vmatpush1.msra.mxu0 0.0
        %645 = vmatprep.subr.mxu0 0.0
        %646 = vmatpush1.msra.mxu0 0.0
        %647 = vmatprep.subr.mxu0 0.0
        %648 = vmatpush1.msra.mxu0 0.0
        %649 = vmatprep.subr.mxu0 0.0
        %650 = vmatpush1.msra.mxu0 0.0
        %651 = vmatprep.subr.mxu0 0.0
        %652 = vmatpush1.msra.mxu0 0.0
        %653 = vmatprep.subr.mxu0 0.0
        %654 = vmatpush1.msra.mxu0 0.0
        %655 = vmatprep.subr.mxu0 0.0
        %656 = vmatpush1.msra.mxu0 0.0
        %657 = vmatprep.subr.mxu0 0.0
        %658 = vmatpush1.msra.mxu0 0.0
        %659 = vmatprep.subr.mxu0 0.0
        %660 = vmatpush1.msra.mxu0 0.0
        %661 = vmatprep.subr.mxu0 0.0
        %662 = vmatpush1.msra.mxu0 0.0
        %663 = vmatprep.subr.mxu0 0.0
        %664 = vmatpush1.msra.mxu0 0.0
        %665 = vmatprep.subr.mxu0 0.0
        %666 = vmatpush1.msra.mxu0 0.0
        %667 = vmatprep.subr.mxu0 0.0
        %668 = vmatpush1.msra.mxu0 0.0
        %669 = vmatprep.subr.mxu0 0.0
        %670 = vmatpush1.msra.mxu0 0.0
        %671 = vmatprep.subr.mxu0 0.0
        %672 = vmatpush1.msra.mxu0 0.0
        %673 = vmatprep.mubr.f32.mxu0 0.0
        %674 = vmatmul.mubr.f32.gmra.mrb[0].mxu0 %v586
        %v675 = vpop.f32.mrb[0].mxu0
        %v676 = vadd.f32 0.0, %v675
        %v677 = vpop.f32.mrb[0].mxu0
        %678 = vmatprep.mubr.f32.mxu0 0.0
        %679 = vmatmul.mubr.f32.gmra.mrb[0].mxu0 %v589
        %v680 = vpop.f32.mrb[0].mxu0
        %v681 = vadd.f32 0.0, %v680
        %v682 = vpop.f32.mrb[0].mxu0
        %683 = vmatprep.mubr.f32.mxu0 0.0
        %684 = vmatmul.mubr.f32.gmra.mrb[0].mxu0 %v592
        %v685 = vpop.f32.mrb[0].mxu0
        %v686 = vadd.f32 0.0, %v685
        %v687 = vpop.f32.mrb[0].mxu0
        %688 = vmatprep.mubr.f32.mxu0 0.0
        %689 = vmatmul.mubr.f32.gmra.mrb[0].mxu0 %v595
        %v690 = vpop.f32.mrb[0].mxu0
        %v691 = vadd.f32 0.0, %v690
        %v692 = vpop.f32.mrb[0].mxu0
        %693 = vmatprep.mubr.f32.mxu0 0.0
        %694 = vmatmul.mubr.f32.gmra.mrb[0].mxu0 %v598
        %v695 = vpop.f32.mrb[0].mxu0
        %v696 = vadd.f32 0.0, %v695
        %v697 = vpop.f32.mrb[0].mxu0
        %698 = vmatprep.mubr.f32.mxu0 0.0
        %699 = vmatmul.mubr.f32.gmra.mrb[0].mxu0 %v601
        %v700 = vpop.f32.mrb[0].mxu0
        %v701 = vadd.f32 0.0, %v700
        %v702 = vpop.f32.mrb[0].mxu0
        %703 = vmatprep.mubr.f32.mxu0 0.0
        %704 = vmatmul.mubr.f32.gmra.mrb[0].mxu0 %v604
        %v705 = vpop.f32.mrb[0].mxu0
        %v706 = vadd.f32 0.0, %v705
        %v707 = vpop.f32.mrb[0].mxu0
        %708 = vmatprep.mubr.f32.mxu0 0.0
        %709 = vmatmul.mubr.f32.gmra.mrb[0].mxu0 %v607
        %v710 = vpop.f32.mrb[0].mxu0
        %v711 = vadd.f32 0.0, %v710
        %v712 = vpop.f32.mrb[0].mxu0
        %713 = vdwg.mxu0
        %v715 = vsel %vm584, %v562, 0
        %v718 = vsel %vm584, %v563, 0
        %v721 = vsel %vm584, %v564, 0
        %v724 = vsel %vm584, %v565, 0
        %v727 = vsel %vm584, %v566, 0
        %v730 = vsel %vm584, %v567, 0
        %v733 = vsel %vm584, %v568, 0
        %735 = vmatprep.subr.mxu0 0.0
        %736 = vmatpush1.msra.mxu0 %v569
        %737 = vmatprep.subr.mxu0 0.0
        %738 = vmatpush1.msra.mxu0 0.0
        %739 = vmatprep.subr.mxu0 0.0
        %740 = vmatpush1.msra.mxu0 0.0
        %741 = vmatprep.subr.mxu0 0.0
        %742 = vmatpush1.msra.mxu0 0.0
        %743 = vmatprep.subr.mxu0 0.0
        %744 = vmatpush1.msra.mxu0 0.0
        %745 = vmatprep.subr.mxu0 0.0
        %746 = vmatpush1.msra.mxu0 0.0
        %747 = vmatprep.subr.mxu0 0.0
        %748 = vmatpush1.msra.mxu0 0.0
        %749 = vmatprep.subr.mxu0 0.0
        %750 = vmatpush1.msra.mxu0 0.0
        %751 = vmatprep.subr.mxu0 0.0
        %752 = vmatpush1.msra.mxu0 0.0
        %753 = vmatprep.subr.mxu0 0.0
        %754 = vmatpush1.msra.mxu0 0.0
        %755 = vmatprep.subr.mxu0 0.0
        %756 = vmatpush1.msra.mxu0 0.0
        %757 = vmatprep.subr.mxu0 0.0
        %758 = vmatpush1.msra.mxu0 0.0
        %759 = vmatprep.subr.mxu0 0.0
        %760 = vmatpush1.msra.mxu0 0.0
        %761 = vmatprep.subr.mxu0 0.0
        %762 = vmatpush1.msra.mxu0 0.0
        %763 = vmatprep.subr.mxu0 0.0
        %764 = vmatpush1.msra.mxu0 0.0
        %765 = vmatprep.subr.mxu0 0.0
        %766 = vmatpush1.msra.mxu0 0.0
        %767 = vmatprep.subr.mxu0 0.0
        %768 = vmatpush1.msra.mxu0 0.0
        %769 = vmatprep.subr.mxu0 0.0
        %770 = vmatpush1.msra.mxu0 0.0
        %771 = vmatprep.subr.mxu0 0.0
        %772 = vmatpush1.msra.mxu0 0.0
        %773 = vmatprep.subr.mxu0 0.0
        %774 = vmatpush1.msra.mxu0 0.0
        %775 = vmatprep.subr.mxu0 0.0
        %776 = vmatpush1.msra.mxu0 0.0
        %777 = vmatprep.subr.mxu0 0.0
        %778 = vmatpush1.msra.mxu0 0.0
        %779 = vmatprep.subr.mxu0 0.0
        %780 = vmatpush1.msra.mxu0 0.0
        %781 = vmatprep.subr.mxu0 0.0
        %782 = vmatpush1.msra.mxu0 0.0
        %783 = vmatprep.subr.mxu0 0.0
        %784 = vmatpush1.msra.mxu0 0.0
        %785 = vmatprep.subr.mxu0 0.0
        %786 = vmatpush1.msra.mxu0 0.0
        %787 = vmatprep.subr.mxu0 0.0
        %788 = vmatpush1.msra.mxu0 0.0
        %789 = vmatprep.subr.mxu0 0.0
        %790 = vmatpush1.msra.mxu0 0.0
        %791 = vmatprep.subr.mxu0 0.0
        %792 = vmatpush1.msra.mxu0 0.0
        %793 = vmatprep.subr.mxu0 0.0
        %794 = vmatpush1.msra.mxu0 0.0
        %795 = vmatprep.subr.mxu0 0.0
        %796 = vmatpush1.msra.mxu0 0.0
        %797 = vmatprep.subr.mxu0 0.0
        %798 = vmatpush1.msra.mxu0 0.0
        %799 = vmatprep.mubr.f32.mxu0 0.0
        %800 = vmatmul.mubr.f32.gmra.mrb[0].mxu0 %v586
        %v801 = vpop.f32.mrb[0].mxu0
        %v802 = vadd.f32 %v676, %v801
        %v803 = vpop.f32.mrb[0].mxu0
        %804 = vmatprep.mubr.f32.mxu0 0.0
        %805 = vmatmul.mubr.f32.gmra.mrb[0].mxu0 %v715
        %v806 = vpop.f32.mrb[0].mxu0
        %v807 = vadd.f32 %v681, %v806
        %v808 = vpop.f32.mrb[0].mxu0
        %809 = vmatprep.mubr.f32.mxu0 0.0
        %810 = vmatmul.mubr.f32.gmra.mrb[0].mxu0 %v718
        %v811 = vpop.f32.mrb[0].mxu0
        %v812 = vadd.f32 %v686, %v811
        %v813 = vpop.f32.mrb[0].mxu0
        %814 = vmatprep.mubr.f32.mxu0 0.0
        %815 = vmatmul.mubr.f32.gmra.mrb[0].mxu0 %v721
        %v816 = vpop.f32.mrb[0].mxu0
        %v817 = vadd.f32 %v691, %v816
        %v818 = vpop.f32.mrb[0].mxu0
        %819 = vmatprep.mubr.f32.mxu0 0.0
        %820 = vmatmul.mubr.f32.gmra.mrb[0].mxu0 %v724
        %v821 = vpop.f32.mrb[0].mxu0
        %v822 = vadd.f32 %v696, %v821
        %v823 = vpop.f32.mrb[0].mxu0
        %824 = vmatprep.mubr.f32.mxu0 0.0
        %825 = vmatmul.mubr.f32.gmra.mrb[0].mxu0 %v727
        %v826 = vpop.f32.mrb[0].mxu0
        %v827 = vadd.f32 %v701, %v826
        %v828 = vpop.f32.mrb[0].mxu0
        %829 = vmatprep.mubr.f32.mxu0 0.0
        %830 = vmatmul.mubr.f32.gmra.mrb[0].mxu0 %v730
        %v831 = vpop.f32.mrb[0].mxu0
        %v832 = vadd.f32 %v706, %v831
        %v833 = vpop.f32.mrb[0].mxu0
        %834 = vmatprep.mubr.f32.mxu0 0.0
        %835 = vmatmul.mubr.f32.gmra.mrb[0].mxu0 %v733
        %v836 = vpop.f32.mrb[0].mxu0
        %v837 = vadd.f32 %v711, %v836
        %v838 = vpop.f32.mrb[0].mxu0
        %839 = vdwg.mxu0
        %v840 = vrot.slane %v530, 1
        %v841 = vrot.slane %v531, 1
        %v842 = vrot.slane %v532, 1
        %v843 = vrot.slane %v533, 1
        %v844 = vrot.slane %v534, 1
        %v845 = vrot.slane %v535, 1
        %v846 = vrot.slane %v536, 1
        %v847 = vrot.slane %v537, 1
        %vm848 = vcmp.lt.s32.totalorder %v539, 7
        %v849 = vsel %vm848, %v846, %v847
        %v850 = vsel %vm848, %v845, %v846
        %v851 = vsel %vm848, %v844, %v845
        %v852 = vsel %vm848, %v843, %v844
        %v853 = vsel %vm848, %v842, %v843
        %v854 = vsel %vm848, %v841, %v842
        %v855 = vsel %vm848, %v840, %v841
        %v856 = vadd.s32 %v539, 1
        %vm857 = vcmp.ge.s32.totalorder %v856, 0
        %vm858 = vcmp.lt.s32.totalorder %v856, 8
        %vm859 = vmand %vm857, %vm858
        %v860 = vsel %vm859, 1, 0
        %vm861 = vcmp.eq.s32.totalorder %v860, 1
        %v862 = vsel %vm861, %v855, 0.0
        %v863 = vsel %vm861, %v854, 0.0
        %v864 = vsel %vm861, %v853, 0.0
        %v865 = vsel %vm861, %v852, 0.0
        %v866 = vsel %vm861, %v851, 0.0
        %v867 = vsel %vm861, %v850, 0.0
        %v868 = vsel %vm861, %v849, 0.0
        %s869 = scalar_lea.vmem %s4, 16
        %v870 = vld [vmem:[%s869] sm:$0xff]
        %v872 = vsel %vm584, %v862, 0
        %v875 = vsel %vm584, %v863, 0
        %v878 = vsel %vm584, %v864, 0
        %v881 = vsel %vm584, %v865, 0
        %v884 = vsel %vm584, %v866, 0
        %v887 = vsel %vm584, %v867, 0
        %v890 = vsel %vm584, %v868, 0
        %892 = vmatprep.subr.mxu0 0.0
        %893 = vmatpush1.msra.mxu0 %v870
        %894 = vmatprep.subr.mxu0 0.0
        %895 = vmatpush1.msra.mxu0 0.0
        %896 = vmatprep.subr.mxu0 0.0
        %897 = vmatpush1.msra.mxu0 0.0
        %898 = vmatprep.subr.mxu0 0.0
        %899 = vmatpush1.msra.mxu0 0.0
        %900 = vmatprep.subr.mxu0 0.0
        %901 = vmatpush1.msra.mxu0 0.0
        %902 = vmatprep.subr.mxu0 0.0
        %903 = vmatpush1.msra.mxu0 0.0
        %904 = vmatprep.subr.mxu0 0.0
        %905 = vmatpush1.msra.mxu0 0.0
        %906 = vmatprep.subr.mxu0 0.0
        %907 = vmatpush1.msra.mxu0 0.0
        %908 = vmatprep.subr.mxu0 0.0
        %909 = vmatpush1.msra.mxu0 0.0
        %910 = vmatprep.subr.mxu0 0.0
        %911 = vmatpush1.msra.mxu0 0.0
        %912 = vmatprep.subr.mxu0 0.0
        %913 = vmatpush1.msra.mxu0 0.0
        %914 = vmatprep.subr.mxu0 0.0
        %915 = vmatpush1.msra.mxu0 0.0
        %916 = vmatprep.subr.mxu0 0.0
        %917 = vmatpush1.msra.mxu0 0.0
        %918 = vmatprep.subr.mxu0 0.0
        %919 = vmatpush1.msra.mxu0 0.0
        %920 = vmatprep.subr.mxu0 0.0
        %921 = vmatpush1.msra.mxu0 0.0
        %922 = vmatprep.subr.mxu0 0.0
        %923 = vmatpush1.msra.mxu0 0.0
        %924 = vmatprep.subr.mxu0 0.0
        %925 = vmatpush1.msra.mxu0 0.0
        %926 = vmatprep.subr.mxu0 0.0
        %927 = vmatpush1.msra.mxu0 0.0
        %928 = vmatprep.subr.mxu0 0.0
        %929 = vmatpush1.msra.mxu0 0.0
        %930 = vmatprep.subr.mxu0 0.0
        %931 = vmatpush1.msra.mxu0 0.0
        %932 = vmatprep.subr.mxu0 0.0
        %933 = vmatpush1.msra.mxu0 0.0
        %934 = vmatprep.subr.mxu0 0.0
        %935 = vmatpush1.msra.mxu0 0.0
        %936 = vmatprep.subr.mxu0 0.0
        %937 = vmatpush1.msra.mxu0 0.0
        %938 = vmatprep.subr.mxu0 0.0
        %939 = vmatpush1.msra.mxu0 0.0
        %940 = vmatprep.subr.mxu0 0.0
        %941 = vmatpush1.msra.mxu0 0.0
        %942 = vmatprep.subr.mxu0 0.0
        %943 = vmatpush1.msra.mxu0 0.0
        %944 = vmatprep.subr.mxu0 0.0
        %945 = vmatpush1.msra.mxu0 0.0
        %946 = vmatprep.subr.mxu0 0.0
        %947 = vmatpush1.msra.mxu0 0.0
        %948 = vmatprep.subr.mxu0 0.0
        %949 = vmatpush1.msra.mxu0 0.0
        %950 = vmatprep.subr.mxu0 0.0
        %951 = vmatpush1.msra.mxu0 0.0
        %952 = vmatprep.subr.mxu0 0.0
        %953 = vmatpush1.msra.mxu0 0.0
        %954 = vmatprep.subr.mxu0 0.0
        %955 = vmatpush1.msra.mxu0 0.0
        %956 = vmatprep.mubr.f32.mxu0 0.0
        %957 = vmatmul.mubr.f32.gmra.mrb[0].mxu0 %v586
        %v958 = vpop.f32.mrb[0].mxu0
        %v959 = vadd.f32 0.0, %v958
        %v960 = vpop.f32.mrb[0].mxu0
        %961 = vmatprep.mubr.f32.mxu0 0.0
        %962 = vmatmul.mubr.f32.gmra.mrb[0].mxu0 %v872
        %v963 = vpop.f32.mrb[0].mxu0
        %v964 = vadd.f32 0.0, %v963
        %v965 = vpop.f32.mrb[0].mxu0
        %966 = vmatprep.mubr.f32.mxu0 0.0
        %967 = vmatmul.mubr.f32.gmra.mrb[0].mxu0 %v875
        %v968 = vpop.f32.mrb[0].mxu0
        %v969 = vadd.f32 0.0, %v968
        %v970 = vpop.f32.mrb[0].mxu0
        %971 = vmatprep.mubr.f32.mxu0 0.0
        %972 = vmatmul.mubr.f32.gmra.mrb[0].mxu0 %v878
        %v973 = vpop.f32.mrb[0].mxu0
        %v974 = vadd.f32 0.0, %v973
        %v975 = vpop.f32.mrb[0].mxu0
        %976 = vmatprep.mubr.f32.mxu0 0.0
        %977 = vmatmul.mubr.f32.gmra.mrb[0].mxu0 %v881
        %v978 = vpop.f32.mrb[0].mxu0
        %v979 = vadd.f32 0.0, %v978
        %v980 = vpop.f32.mrb[0].mxu0
        %981 = vmatprep.mubr.f32.mxu0 0.0
        %982 = vmatmul.mubr.f32.gmra.mrb[0].mxu0 %v884
        %v983 = vpop.f32.mrb[0].mxu0
        %v984 = vadd.f32 0.0, %v983
        %v985 = vpop.f32.mrb[0].mxu0
        %986 = vmatprep.mubr.f32.mxu0 0.0
        %987 = vmatmul.mubr.f32.gmra.mrb[0].mxu0 %v887
        %v988 = vpop.f32.mrb[0].mxu0
        %v989 = vadd.f32 0.0, %v988
        %v990 = vpop.f32.mrb[0].mxu0
        %991 = vmatprep.mubr.f32.mxu0 0.0
        %992 = vmatmul.mubr.f32.gmra.mrb[0].mxu0 %v890
        %v993 = vpop.f32.mrb[0].mxu0
        %v994 = vadd.f32 0.0, %v993
        %v995 = vpop.f32.mrb[0].mxu0
        %996 = vdwg.mxu0
        %v997 = vadd.f32 %v802, %v959
        %v998 = vadd.f32 %v807, %v964
        %v999 = vadd.f32 %v812, %v969
        %v1000 = vadd.f32 %v817, %v974
        %v1001 = vadd.f32 %v822, %v979
        %v1002 = vadd.f32 %v827, %v984
        %v1003 = vadd.f32 %v832, %v989
        %v1004 = vadd.f32 %v837, %v994
        %v1005 = vsel %vm548, %v546, %v547
        %v1006 = vsel %vm561, %v1005, 0.0
        %s1007 = scalar_lea.vmem %s4, 24
        %v1008 = vld [vmem:[%s1007] sm:$0xff]
        %v1010 = vsel %vm584, %v1006, 0
        %1012 = vmatprep.subr.mxu0 0.0
        %1013 = vmatpush1.msra.mxu0 %v1008
        %1014 = vmatprep.subr.mxu0 0.0
        %1015 = vmatpush1.msra.mxu0 0.0
        %1016 = vmatprep.subr.mxu0 0.0
        %1017 = vmatpush1.msra.mxu0 0.0
        %1018 = vmatprep.subr.mxu0 0.0
        %1019 = vmatpush1.msra.mxu0 0.0
        %1020 = vmatprep.subr.mxu0 0.0
        %1021 = vmatpush1.msra.mxu0 0.0
        %1022 = vmatprep.subr.mxu0 0.0
        %1023 = vmatpush1.msra.mxu0 0.0
        %1024 = vmatprep.subr.mxu0 0.0
        %1025 = vmatpush1.msra.mxu0 0.0
        %1026 = vmatprep.subr.mxu0 0.0
        %1027 = vmatpush1.msra.mxu0 0.0
        %1028 = vmatprep.subr.mxu0 0.0
        %1029 = vmatpush1.msra.mxu0 0.0
        %1030 = vmatprep.subr.mxu0 0.0
        %1031 = vmatpush1.msra.mxu0 0.0
        %1032 = vmatprep.subr.mxu0 0.0
        %1033 = vmatpush1.msra.mxu0 0.0
        %1034 = vmatprep.subr.mxu0 0.0
        %1035 = vmatpush1.msra.mxu0 0.0
        %1036 = vmatprep.subr.mxu0 0.0
        %1037 = vmatpush1.msra.mxu0 0.0
        %1038 = vmatprep.subr.mxu0 0.0
        %1039 = vmatpush1.msra.mxu0 0.0
        %1040 = vmatprep.subr.mxu0 0.0
        %1041 = vmatpush1.msra.mxu0 0.0
        %1042 = vmatprep.subr.mxu0 0.0
        %1043 = vmatpush1.msra.mxu0 0.0
        %1044 = vmatprep.subr.mxu0 0.0
        %1045 = vmatpush1.msra.mxu0 0.0
        %1046 = vmatprep.subr.mxu0 0.0
        %1047 = vmatpush1.msra.mxu0 0.0
        %1048 = vmatprep.subr.mxu0 0.0
        %1049 = vmatpush1.msra.mxu0 0.0
        %1050 = vmatprep.subr.mxu0 0.0
        %1051 = vmatpush1.msra.mxu0 0.0
        %1052 = vmatprep.subr.mxu0 0.0
        %1053 = vmatpush1.msra.mxu0 0.0
        %1054 = vmatprep.subr.mxu0 0.0
        %1055 = vmatpush1.msra.mxu0 0.0
        %1056 = vmatprep.subr.mxu0 0.0
        %1057 = vmatpush1.msra.mxu0 0.0
        %1058 = vmatprep.subr.mxu0 0.0
        %1059 = vmatpush1.msra.mxu0 0.0
        %1060 = vmatprep.subr.mxu0 0.0
        %1061 = vmatpush1.msra.mxu0 0.0
        %1062 = vmatprep.subr.mxu0 0.0
        %1063 = vmatpush1.msra.mxu0 0.0
        %1064 = vmatprep.subr.mxu0 0.0
        %1065 = vmatpush1.msra.mxu0 0.0
        %1066 = vmatprep.subr.mxu0 0.0
        %1067 = vmatpush1.msra.mxu0 0.0
        %1068 = vmatprep.subr.mxu0 0.0
        %1069 = vmatpush1.msra.mxu0 0.0
        %1070 = vmatprep.subr.mxu0 0.0
        %1071 = vmatpush1.msra.mxu0 0.0
        %1072 = vmatprep.subr.mxu0 0.0
        %1073 = vmatpush1.msra.mxu0 0.0
        %1074 = vmatprep.subr.mxu0 0.0
        %1075 = vmatpush1.msra.mxu0 0.0
        %1076 = vmatprep.mubr.f32.mxu0 0.0
        %1077 = vmatmul.mubr.f32.gmra.mrb[0].mxu0 %v715
        %v1078 = vpop.f32.mrb[0].mxu0
        %v1079 = vadd.f32 0.0, %v1078
        %v1080 = vpop.f32.mrb[0].mxu0
        %1081 = vmatprep.mubr.f32.mxu0 0.0
        %1082 = vmatmul.mubr.f32.gmra.mrb[0].mxu0 %v718
        %v1083 = vpop.f32.mrb[0].mxu0
        %v1084 = vadd.f32 0.0, %v1083
        %v1085 = vpop.f32.mrb[0].mxu0
        %1086 = vmatprep.mubr.f32.mxu0 0.0
        %1087 = vmatmul.mubr.f32.gmra.mrb[0].mxu0 %v721
        %v1088 = vpop.f32.mrb[0].mxu0
        %v1089 = vadd.f32 0.0, %v1088
        %v1090 = vpop.f32.mrb[0].mxu0
        %1091 = vmatprep.mubr.f32.mxu0 0.0
        %1092 = vmatmul.mubr.f32.gmra.mrb[0].mxu0 %v724
        %v1093 = vpop.f32.mrb[0].mxu0
        %v1094 = vadd.f32 0.0, %v1093
        %v1095 = vpop.f32.mrb[0].mxu0
        %1096 = vmatprep.mubr.f32.mxu0 0.0
        %1097 = vmatmul.mubr.f32.gmra.mrb[0].mxu0 %v727
        %v1098 = vpop.f32.mrb[0].mxu0
        %v1099 = vadd.f32 0.0, %v1098
        %v1100 = vpop.f32.mrb[0].mxu0
        %1101 = vmatprep.mubr.f32.mxu0 0.0
        %1102 = vmatmul.mubr.f32.gmra.mrb[0].mxu0 %v730
        %v1103 = vpop.f32.mrb[0].mxu0
        %v1104 = vadd.f32 0.0, %v1103
        %v1105 = vpop.f32.mrb[0].mxu0
        %1106 = vmatprep.mubr.f32.mxu0 0.0
        %1107 = vmatmul.mubr.f32.gmra.mrb[0].mxu0 %v733
        %v1108 = vpop.f32.mrb[0].mxu0
        %v1109 = vadd.f32 0.0, %v1108
        %v1110 = vpop.f32.mrb[0].mxu0
        %1111 = vmatprep.mubr.f32.mxu0 0.0
        %1112 = vmatmul.mubr.f32.gmra.mrb[0].mxu0 %v1010
        %v1113 = vpop.f32.mrb[0].mxu0
        %v1114 = vadd.f32 0.0, %v1113
        %v1115 = vpop.f32.mrb[0].mxu0
        %1116 = vdwg.mxu0
        %v1117 = vadd.f32 %v997, %v1079
        %v1118 = vadd.f32 %v998, %v1084
        %v1119 = vadd.f32 %v999, %v1089
        %v1120 = vadd.f32 %v1000, %v1094
        %v1121 = vadd.f32 %v1001, %v1099
        %v1122 = vadd.f32 %v1002, %v1104
        %v1123 = vadd.f32 %v1003, %v1109
        %v1124 = vadd.f32 %v1004, %v1114
        %s1125 = scalar_lea.vmem %s4, 32
        %v1126 = vld [vmem:[%s1125] sm:$0xff]
        %v1128 = vsel %vm584, %v530, 0
        %v1131 = vsel %vm584, %v531, 0
        %v1134 = vsel %vm584, %v532, 0
        %v1137 = vsel %vm584, %v533, 0
        %v1140 = vsel %vm584, %v534, 0
        %v1143 = vsel %vm584, %v535, 0
        %v1146 = vsel %vm584, %v536, 0
        %v1149 = vsel %vm584, %v537, 0
        %1151 = vmatprep.subr.mxu0 0.0
        %1152 = vmatpush1.msra.mxu0 %v1126
        %1153 = vmatprep.subr.mxu0 0.0
        %1154 = vmatpush1.msra.mxu0 0.0
        %1155 = vmatprep.subr.mxu0 0.0
        %1156 = vmatpush1.msra.mxu0 0.0
        %1157 = vmatprep.subr.mxu0 0.0
        %1158 = vmatpush1.msra.mxu0 0.0
        %1159 = vmatprep.subr.mxu0 0.0
        %1160 = vmatpush1.msra.mxu0 0.0
        %1161 = vmatprep.subr.mxu0 0.0
        %1162 = vmatpush1.msra.mxu0 0.0
        %1163 = vmatprep.subr.mxu0 0.0
        %1164 = vmatpush1.msra.mxu0 0.0
        %1165 = vmatprep.subr.mxu0 0.0
        %1166 = vmatpush1.msra.mxu0 0.0
        %1167 = vmatprep.subr.mxu0 0.0
        %1168 = vmatpush1.msra.mxu0 0.0
        %1169 = vmatprep.subr.mxu0 0.0
        %1170 = vmatpush1.msra.mxu0 0.0
        %1171 = vmatprep.subr.mxu0 0.0
        %1172 = vmatpush1.msra.mxu0 0.0
        %1173 = vmatprep.subr.mxu0 0.0
        %1174 = vmatpush1.msra.mxu0 0.0
        %1175 = vmatprep.subr.mxu0 0.0
        %1176 = vmatpush1.msra.mxu0 0.0
        %1177 = vmatprep.subr.mxu0 0.0
        %1178 = vmatpush1.msra.mxu0 0.0
        %1179 = vmatprep.subr.mxu0 0.0
        %1180 = vmatpush1.msra.mxu0 0.0
        %1181 = vmatprep.subr.mxu0 0.0
        %1182 = vmatpush1.msra.mxu0 0.0
        %1183 = vmatprep.subr.mxu0 0.0
        %1184 = vmatpush1.msra.mxu0 0.0
        %1185 = vmatprep.subr.mxu0 0.0
        %1186 = vmatpush1.msra.mxu0 0.0
        %1187 = vmatprep.subr.mxu0 0.0
        %1188 = vmatpush1.msra.mxu0 0.0
        %1189 = vmatprep.subr.mxu0 0.0
        %1190 = vmatpush1.msra.mxu0 0.0
        %1191 = vmatprep.subr.mxu0 0.0
        %1192 = vmatpush1.msra.mxu0 0.0
        %1193 = vmatprep.subr.mxu0 0.0
        %1194 = vmatpush1.msra.mxu0 0.0
        %1195 = vmatprep.subr.mxu0 0.0
        %1196 = vmatpush1.msra.mxu0 0.0
        %1197 = vmatprep.subr.mxu0 0.0
        %1198 = vmatpush1.msra.mxu0 0.0
        %1199 = vmatprep.subr.mxu0 0.0
        %1200 = vmatpush1.msra.mxu0 0.0
        %1201 = vmatprep.subr.mxu0 0.0
        %1202 = vmatpush1.msra.mxu0 0.0
        %1203 = vmatprep.subr.mxu0 0.0
        %1204 = vmatpush1.msra.mxu0 0.0
        %1205 = vmatprep.subr.mxu0 0.0
        %1206 = vmatpush1.msra.mxu0 0.0
        %1207 = vmatprep.subr.mxu0 0.0
        %1208 = vmatpush1.msra.mxu0 0.0
        %1209 = vmatprep.subr.mxu0 0.0
        %1210 = vmatpush1.msra.mxu0 0.0
        %1211 = vmatprep.subr.mxu0 0.0
        %1212 = vmatpush1.msra.mxu0 0.0
        %1213 = vmatprep.subr.mxu0 0.0
        %1214 = vmatpush1.msra.mxu0 0.0
        %1215 = vmatprep.mubr.f32.mxu0 0.0
        %1216 = vmatmul.mubr.f32.gmra.mrb[0].mxu0 %v1128
        %v1217 = vpop.f32.mrb[0].mxu0
        %v1218 = vadd.f32 0.0, %v1217
        %v1219 = vpop.f32.mrb[0].mxu0
        %1220 = vmatprep.mubr.f32.mxu0 0.0
        %1221 = vmatmul.mubr.f32.gmra.mrb[0].mxu0 %v1131
        %v1222 = vpop.f32.mrb[0].mxu0
        %v1223 = vadd.f32 0.0, %v1222
        %v1224 = vpop.f32.mrb[0].mxu0
        %1225 = vmatprep.mubr.f32.mxu0 0.0
        %1226 = vmatmul.mubr.f32.gmra.mrb[0].mxu0 %v1134
        %v1227 = vpop.f32.mrb[0].mxu0
        %v1228 = vadd.f32 0.0, %v1227
        %v1229 = vpop.f32.mrb[0].mxu0
        %1230 = vmatprep.mubr.f32.mxu0 0.0
        %1231 = vmatmul.mubr.f32.gmra.mrb[0].mxu0 %v1137
        %v1232 = vpop.f32.mrb[0].mxu0
        %v1233 = vadd.f32 0.0, %v1232
        %v1234 = vpop.f32.mrb[0].mxu0
        %1235 = vmatprep.mubr.f32.mxu0 0.0
        %1236 = vmatmul.mubr.f32.gmra.mrb[0].mxu0 %v1140
        %v1237 = vpop.f32.mrb[0].mxu0
        %v1238 = vadd.f32 0.0, %v1237
        %v1239 = vpop.f32.mrb[0].mxu0
        %1240 = vmatprep.mubr.f32.mxu0 0.0
        %1241 = vmatmul.mubr.f32.gmra.mrb[0].mxu0 %v1143
        %v1242 = vpop.f32.mrb[0].mxu0
        %v1243 = vadd.f32 0.0, %v1242
        %v1244 = vpop.f32.mrb[0].mxu0
        %1245 = vmatprep.mubr.f32.mxu0 0.0
        %1246 = vmatmul.mubr.f32.gmra.mrb[0].mxu0 %v1146
        %v1247 = vpop.f32.mrb[0].mxu0
        %v1248 = vadd.f32 0.0, %v1247
        %v1249 = vpop.f32.mrb[0].mxu0
        %1250 = vmatprep.mubr.f32.mxu0 0.0
        %1251 = vmatmul.mubr.f32.gmra.mrb[0].mxu0 %v1149
        %v1252 = vpop.f32.mrb[0].mxu0
        %v1253 = vadd.f32 0.0, %v1252
        %v1254 = vpop.f32.mrb[0].mxu0
        %1255 = vdwg.mxu0
        %v1256 = vadd.f32 %v1117, %v1218
        %v1257 = vadd.f32 %v1118, %v1223
        %v1258 = vadd.f32 %v1119, %v1228
        %v1259 = vadd.f32 %v1120, %v1233
        %v1260 = vadd.f32 %v1121, %v1238
        %v1261 = vadd.f32 %v1122, %v1243
        %v1262 = vadd.f32 %v1123, %v1248
        %v1263 = vadd.f32 %v1124, %v1253
        %v1264 = vsel %vm848, %v847, %v840
        %v1265 = vsel %vm861, %v1264, 0.0
        %s1266 = scalar_lea.vmem %s4, 40
        %v1267 = vld [vmem:[%s1266] sm:$0xff]
        %v1269 = vsel %vm584, %v1265, 0
        %1271 = vmatprep.subr.mxu0 0.0
        %1272 = vmatpush1.msra.mxu0 %v1267
        %1273 = vmatprep.subr.mxu0 0.0
        %1274 = vmatpush1.msra.mxu0 0.0
        %1275 = vmatprep.subr.mxu0 0.0
        %1276 = vmatpush1.msra.mxu0 0.0
        %1277 = vmatprep.subr.mxu0 0.0
        %1278 = vmatpush1.msra.mxu0 0.0
        %1279 = vmatprep.subr.mxu0 0.0
        %1280 = vmatpush1.msra.mxu0 0.0
        %1281 = vmatprep.subr.mxu0 0.0
        %1282 = vmatpush1.msra.mxu0 0.0
        %1283 = vmatprep.subr.mxu0 0.0
        %1284 = vmatpush1.msra.mxu0 0.0
        %1285 = vmatprep.subr.mxu0 0.0
        %1286 = vmatpush1.msra.mxu0 0.0
        %1287 = vmatprep.subr.mxu0 0.0
        %1288 = vmatpush1.msra.mxu0 0.0
        %1289 = vmatprep.subr.mxu0 0.0
        %1290 = vmatpush1.msra.mxu0 0.0
        %1291 = vmatprep.subr.mxu0 0.0
        %1292 = vmatpush1.msra.mxu0 0.0
        %1293 = vmatprep.subr.mxu0 0.0
        %1294 = vmatpush1.msra.mxu0 0.0
        %1295 = vmatprep.subr.mxu0 0.0
        %1296 = vmatpush1.msra.mxu0 0.0
        %1297 = vmatprep.subr.mxu0 0.0
        %1298 = vmatpush1.msra.mxu0 0.0
        %1299 = vmatprep.subr.mxu0 0.0
        %1300 = vmatpush1.msra.mxu0 0.0
        %1301 = vmatprep.subr.mxu0 0.0
        %1302 = vmatpush1.msra.mxu0 0.0
        %1303 = vmatprep.subr.mxu0 0.0
        %1304 = vmatpush1.msra.mxu0 0.0
        %1305 = vmatprep.subr.mxu0 0.0
        %1306 = vmatpush1.msra.mxu0 0.0
        %1307 = vmatprep.subr.mxu0 0.0
        %1308 = vmatpush1.msra.mxu0 0.0
        %1309 = vmatprep.subr.mxu0 0.0
        %1310 = vmatpush1.msra.mxu0 0.0
        %1311 = vmatprep.subr.mxu0 0.0
        %1312 = vmatpush1.msra.mxu0 0.0
        %1313 = vmatprep.subr.mxu0 0.0
        %1314 = vmatpush1.msra.mxu0 0.0
        %1315 = vmatprep.subr.mxu0 0.0
        %1316 = vmatpush1.msra.mxu0 0.0
        %1317 = vmatprep.subr.mxu0 0.0
        %1318 = vmatpush1.msra.mxu0 0.0
        %1319 = vmatprep.subr.mxu0 0.0
        %1320 = vmatpush1.msra.mxu0 0.0
        %1321 = vmatprep.subr.mxu0 0.0
        %1322 = vmatpush1.msra.mxu0 0.0
        %1323 = vmatprep.subr.mxu0 0.0
        %1324 = vmatpush1.msra.mxu0 0.0
        %1325 = vmatprep.subr.mxu0 0.0
        %1326 = vmatpush1.msra.mxu0 0.0
        %1327 = vmatprep.subr.mxu0 0.0
        %1328 = vmatpush1.msra.mxu0 0.0
        %1329 = vmatprep.subr.mxu0 0.0
        %1330 = vmatpush1.msra.mxu0 0.0
        %1331 = vmatprep.subr.mxu0 0.0
        %1332 = vmatpush1.msra.mxu0 0.0
        %1333 = vmatprep.subr.mxu0 0.0
        %1334 = vmatpush1.msra.mxu0 0.0
        %1335 = vmatprep.mubr.f32.mxu0 0.0
        %1336 = vmatmul.mubr.f32.gmra.mrb[0].mxu0 %v872
        %v1337 = vpop.f32.mrb[0].mxu0
        %v1338 = vadd.f32 0.0, %v1337
        %v1339 = vpop.f32.mrb[0].mxu0
        %1340 = vmatprep.mubr.f32.mxu0 0.0
        %1341 = vmatmul.mubr.f32.gmra.mrb[0].mxu0 %v875
        %v1342 = vpop.f32.mrb[0].mxu0
        %v1343 = vadd.f32 0.0, %v1342
        %v1344 = vpop.f32.mrb[0].mxu0
        %1345 = vmatprep.mubr.f32.mxu0 0.0
        %1346 = vmatmul.mubr.f32.gmra.mrb[0].mxu0 %v878
        %v1347 = vpop.f32.mrb[0].mxu0
        %v1348 = vadd.f32 0.0, %v1347
        %v1349 = vpop.f32.mrb[0].mxu0
        %1350 = vmatprep.mubr.f32.mxu0 0.0
        %1351 = vmatmul.mubr.f32.gmra.mrb[0].mxu0 %v881
        %v1352 = vpop.f32.mrb[0].mxu0
        %v1353 = vadd.f32 0.0, %v1352
        %v1354 = vpop.f32.mrb[0].mxu0
        %1355 = vmatprep.mubr.f32.mxu0 0.0
        %1356 = vmatmul.mubr.f32.gmra.mrb[0].mxu0 %v884
        %v1357 = vpop.f32.mrb[0].mxu0
        %v1358 = vadd.f32 0.0, %v1357
        %v1359 = vpop.f32.mrb[0].mxu0
        %1360 = vmatprep.mubr.f32.mxu0 0.0
        %1361 = vmatmul.mubr.f32.gmra.mrb[0].mxu0 %v887
        %v1362 = vpop.f32.mrb[0].mxu0
        %v1363 = vadd.f32 0.0, %v1362
        %v1364 = vpop.f32.mrb[0].mxu0
        %1365 = vmatprep.mubr.f32.mxu0 0.0
        %1366 = vmatmul.mubr.f32.gmra.mrb[0].mxu0 %v890
        %v1367 = vpop.f32.mrb[0].mxu0
        %v1368 = vadd.f32 0.0, %v1367
        %v1369 = vpop.f32.mrb[0].mxu0
        %1370 = vmatprep.mubr.f32.mxu0 0.0
        %1371 = vmatmul.mubr.f32.gmra.mrb[0].mxu0 %v1269
        %v1372 = vpop.f32.mrb[0].mxu0
        %v1373 = vadd.f32 0.0, %v1372
        %v1374 = vpop.f32.mrb[0].mxu0
        %1375 = vdwg.mxu0
        %v1376 = vadd.f32 %v1256, %v1338
        %v1377 = vadd.f32 %v1257, %v1343
        %v1378 = vadd.f32 %v1258, %v1348
        %v1379 = vadd.f32 %v1259, %v1353
        %v1380 = vadd.f32 %v1260, %v1358
        %v1381 = vadd.f32 %v1261, %v1363
        %v1382 = vadd.f32 %v1262, %v1368
        %v1383 = vadd.f32 %v1263, %v1373
        %s1384 = scalar_lea.vmem %s4, 48
        %v1385 = vld [vmem:[%s1384] sm:$0xff]
        %1386 = vmatprep.subr.mxu0 0.0
        %1387 = vmatpush1.msra.mxu0 %v1385
        %1388 = vmatprep.subr.mxu0 0.0
        %1389 = vmatpush1.msra.mxu0 0.0
        %1390 = vmatprep.subr.mxu0 0.0
        %1391 = vmatpush1.msra.mxu0 0.0
        %1392 = vmatprep.subr.mxu0 0.0
        %1393 = vmatpush1.msra.mxu0 0.0
        %1394 = vmatprep.subr.mxu0 0.0
        %1395 = vmatpush1.msra.mxu0 0.0
        %1396 = vmatprep.subr.mxu0 0.0
        %1397 = vmatpush1.msra.mxu0 0.0
        %1398 = vmatprep.subr.mxu0 0.0
        %1399 = vmatpush1.msra.mxu0 0.0
        %1400 = vmatprep.subr.mxu0 0.0
        %1401 = vmatpush1.msra.mxu0 0.0
        %1402 = vmatprep.subr.mxu0 0.0
        %1403 = vmatpush1.msra.mxu0 0.0
        %1404 = vmatprep.subr.mxu0 0.0
        %1405 = vmatpush1.msra.mxu0 0.0
        %1406 = vmatprep.subr.mxu0 0.0
        %1407 = vmatpush1.msra.mxu0 0.0
        %1408 = vmatprep.subr.mxu0 0.0
        %1409 = vmatpush1.msra.mxu0 0.0
        %1410 = vmatprep.subr.mxu0 0.0
        %1411 = vmatpush1.msra.mxu0 0.0
        %1412 = vmatprep.subr.mxu0 0.0
        %1413 = vmatpush1.msra.mxu0 0.0
        %1414 = vmatprep.subr.mxu0 0.0
        %1415 = vmatpush1.msra.mxu0 0.0
        %1416 = vmatprep.subr.mxu0 0.0
        %1417 = vmatpush1.msra.mxu0 0.0
        %1418 = vmatprep.subr.mxu0 0.0
        %1419 = vmatpush1.msra.mxu0 0.0
        %1420 = vmatprep.subr.mxu0 0.0
        %1421 = vmatpush1.msra.mxu0 0.0
        %1422 = vmatprep.subr.mxu0 0.0
        %1423 = vmatpush1.msra.mxu0 0.0
        %1424 = vmatprep.subr.mxu0 0.0
        %1425 = vmatpush1.msra.mxu0 0.0
        %1426 = vmatprep.subr.mxu0 0.0
        %1427 = vmatpush1.msra.mxu0 0.0
        %1428 = vmatprep.subr.mxu0 0.0
        %1429 = vmatpush1.msra.mxu0 0.0
        %1430 = vmatprep.subr.mxu0 0.0
        %1431 = vmatpush1.msra.mxu0 0.0
        %1432 = vmatprep.subr.mxu0 0.0
        %1433 = vmatpush1.msra.mxu0 0.0
        %1434 = vmatprep.subr.mxu0 0.0
        %1435 = vmatpush1.msra.mxu0 0.0
        %1436 = vmatprep.subr.mxu0 0.0
        %1437 = vmatpush1.msra.mxu0 0.0
        %1438 = vmatprep.subr.mxu0 0.0
        %1439 = vmatpush1.msra.mxu0 0.0
        %1440 = vmatprep.subr.mxu0 0.0
        %1441 = vmatpush1.msra.mxu0 0.0
        %1442 = vmatprep.subr.mxu0 0.0
        %1443 = vmatpush1.msra.mxu0 0.0
        %1444 = vmatprep.subr.mxu0 0.0
        %1445 = vmatpush1.msra.mxu0 0.0
        %1446 = vmatprep.subr.mxu0 0.0
        %1447 = vmatpush1.msra.mxu0 0.0
        %1448 = vmatprep.subr.mxu0 0.0
        %1449 = vmatpush1.msra.mxu0 0.0
        %1450 = vmatprep.mubr.f32.mxu0 0.0
        %1451 = vmatmul.mubr.f32.gmra.mrb[0].mxu0 %v718
        %v1452 = vpop.f32.mrb[0].mxu0
        %v1453 = vadd.f32 0.0, %v1452
        %v1454 = vpop.f32.mrb[0].mxu0
        %1455 = vmatprep.mubr.f32.mxu0 0.0
        %1456 = vmatmul.mubr.f32.gmra.mrb[0].mxu0 %v721
        %v1457 = vpop.f32.mrb[0].mxu0
        %v1458 = vadd.f32 0.0, %v1457
        %v1459 = vpop.f32.mrb[0].mxu0
        %1460 = vmatprep.mubr.f32.mxu0 0.0
        %1461 = vmatmul.mubr.f32.gmra.mrb[0].mxu0 %v724
        %v1462 = vpop.f32.mrb[0].mxu0
        %v1463 = vadd.f32 0.0, %v1462
        %v1464 = vpop.f32.mrb[0].mxu0
        %1465 = vmatprep.mubr.f32.mxu0 0.0
        %1466 = vmatmul.mubr.f32.gmra.mrb[0].mxu0 %v727
        %v1467 = vpop.f32.mrb[0].mxu0
        %v1468 = vadd.f32 0.0, %v1467
        %v1469 = vpop.f32.mrb[0].mxu0
        %1470 = vmatprep.mubr.f32.mxu0 0.0
        %1471 = vmatmul.mubr.f32.gmra.mrb[0].mxu0 %v730
        %v1472 = vpop.f32.mrb[0].mxu0
        %v1473 = vadd.f32 0.0, %v1472
        %v1474 = vpop.f32.mrb[0].mxu0
        %1475 = vmatprep.mubr.f32.mxu0 0.0
        %1476 = vmatmul.mubr.f32.gmra.mrb[0].mxu0 %v733
        %v1477 = vpop.f32.mrb[0].mxu0
        %v1478 = vadd.f32 0.0, %v1477
        %v1479 = vpop.f32.mrb[0].mxu0
        %1480 = vmatprep.mubr.f32.mxu0 0.0
        %1481 = vmatmul.mubr.f32.gmra.mrb[0].mxu0 %v1010
        %v1482 = vpop.f32.mrb[0].mxu0
        %v1483 = vadd.f32 0.0, %v1482
        %v1484 = vpop.f32.mrb[0].mxu0
        %1485 = vmatprep.mubr.f32.mxu0 0.0
        %1486 = vmatmul.mubr.f32.gmra.mrb[0].mxu0 %v586
        %v1487 = vpop.f32.mrb[0].mxu0
        %v1488 = vadd.f32 0.0, %v1487
        %v1489 = vpop.f32.mrb[0].mxu0
        %1490 = vdwg.mxu0
        %v1491 = vadd.f32 %v1376, %v1453
        %v1492 = vadd.f32 %v1377, %v1458
        %v1493 = vadd.f32 %v1378, %v1463
        %v1494 = vadd.f32 %v1379, %v1468
        %v1495 = vadd.f32 %v1380, %v1473
        %v1496 = vadd.f32 %v1381, %v1478
        %v1497 = vadd.f32 %v1382, %v1483
        %v1498 = vadd.f32 %v1383, %v1488
        %v1499 = vsel %vm574, %v537, 0.0
        %s1500 = scalar_lea.vmem %s4, 56
        %v1501 = vld [vmem:[%s1500] sm:$0xff]
        %v1503 = vsel %vm584, %v1499, 0
        %1505 = vmatprep.subr.mxu0 0.0
        %1506 = vmatpush1.msra.mxu0 %v1501
        %1507 = vmatprep.subr.mxu0 0.0
        %1508 = vmatpush1.msra.mxu0 0.0
        %1509 = vmatprep.subr.mxu0 0.0
        %1510 = vmatpush1.msra.mxu0 0.0
        %1511 = vmatprep.subr.mxu0 0.0
        %1512 = vmatpush1.msra.mxu0 0.0
        %1513 = vmatprep.subr.mxu0 0.0
        %1514 = vmatpush1.msra.mxu0 0.0
        %1515 = vmatprep.subr.mxu0 0.0
        %1516 = vmatpush1.msra.mxu0 0.0
        %1517 = vmatprep.subr.mxu0 0.0
        %1518 = vmatpush1.msra.mxu0 0.0
        %1519 = vmatprep.subr.mxu0 0.0
        %1520 = vmatpush1.msra.mxu0 0.0
        %1521 = vmatprep.subr.mxu0 0.0
        %1522 = vmatpush1.msra.mxu0 0.0
        %1523 = vmatprep.subr.mxu0 0.0
        %1524 = vmatpush1.msra.mxu0 0.0
        %1525 = vmatprep.subr.mxu0 0.0
        %1526 = vmatpush1.msra.mxu0 0.0
        %1527 = vmatprep.subr.mxu0 0.0
        %1528 = vmatpush1.msra.mxu0 0.0
        %1529 = vmatprep.subr.mxu0 0.0
        %1530 = vmatpush1.msra.mxu0 0.0
        %1531 = vmatprep.subr.mxu0 0.0
        %1532 = vmatpush1.msra.mxu0 0.0
        %1533 = vmatprep.subr.mxu0 0.0
        %1534 = vmatpush1.msra.mxu0 0.0
        %1535 = vmatprep.subr.mxu0 0.0
        %1536 = vmatpush1.msra.mxu0 0.0
        %1537 = vmatprep.subr.mxu0 0.0
        %1538 = vmatpush1.msra.mxu0 0.0
        %1539 = vmatprep.subr.mxu0 0.0
        %1540 = vmatpush1.msra.mxu0 0.0
        %1541 = vmatprep.subr.mxu0 0.0
        %1542 = vmatpush1.msra.mxu0 0.0
        %1543 = vmatprep.subr.mxu0 0.0
        %1544 = vmatpush1.msra.mxu0 0.0
        %1545 = vmatprep.subr.mxu0 0.0
        %1546 = vmatpush1.msra.mxu0 0.0
        %1547 = vmatprep.subr.mxu0 0.0
        %1548 = vmatpush1.msra.mxu0 0.0
        %1549 = vmatprep.subr.mxu0 0.0
        %1550 = vmatpush1.msra.mxu0 0.0
        %1551 = vmatprep.subr.mxu0 0.0
        %1552 = vmatpush1.msra.mxu0 0.0
        %1553 = vmatprep.subr.mxu0 0.0
        %1554 = vmatpush1.msra.mxu0 0.0
        %1555 = vmatprep.subr.mxu0 0.0
        %1556 = vmatpush1.msra.mxu0 0.0
        %1557 = vmatprep.subr.mxu0 0.0
        %1558 = vmatpush1.msra.mxu0 0.0
        %1559 = vmatprep.subr.mxu0 0.0
        %1560 = vmatpush1.msra.mxu0 0.0
        %1561 = vmatprep.subr.mxu0 0.0
        %1562 = vmatpush1.msra.mxu0 0.0
        %1563 = vmatprep.subr.mxu0 0.0
        %1564 = vmatpush1.msra.mxu0 0.0
        %1565 = vmatprep.subr.mxu0 0.0
        %1566 = vmatpush1.msra.mxu0 0.0
        %1567 = vmatprep.subr.mxu0 0.0
        %1568 = vmatpush1.msra.mxu0 0.0
        %1569 = vmatprep.mubr.f32.mxu0 0.0
        %1570 = vmatmul.mubr.f32.gmra.mrb[0].mxu0 %v592
        %v1571 = vpop.f32.mrb[0].mxu0
        %v1572 = vadd.f32 0.0, %v1571
        %v1573 = vpop.f32.mrb[0].mxu0
        %1574 = vmatprep.mubr.f32.mxu0 0.0
        %1575 = vmatmul.mubr.f32.gmra.mrb[0].mxu0 %v595
        %v1576 = vpop.f32.mrb[0].mxu0
        %v1577 = vadd.f32 0.0, %v1576
        %v1578 = vpop.f32.mrb[0].mxu0
        %1579 = vmatprep.mubr.f32.mxu0 0.0
        %1580 = vmatmul.mubr.f32.gmra.mrb[0].mxu0 %v598
        %v1581 = vpop.f32.mrb[0].mxu0
        %v1582 = vadd.f32 0.0, %v1581
        %v1583 = vpop.f32.mrb[0].mxu0
        %1584 = vmatprep.mubr.f32.mxu0 0.0
        %1585 = vmatmul.mubr.f32.gmra.mrb[0].mxu0 %v601
        %v1586 = vpop.f32.mrb[0].mxu0
        %v1587 = vadd.f32 0.0, %v1586
        %v1588 = vpop.f32.mrb[0].mxu0
        %1589 = vmatprep.mubr.f32.mxu0 0.0
        %1590 = vmatmul.mubr.f32.gmra.mrb[0].mxu0 %v604
        %v1591 = vpop.f32.mrb[0].mxu0
        %v1592 = vadd.f32 0.0, %v1591
        %v1593 = vpop.f32.mrb[0].mxu0
        %1594 = vmatprep.mubr.f32.mxu0 0.0
        %1595 = vmatmul.mubr.f32.gmra.mrb[0].mxu0 %v607
        %v1596 = vpop.f32.mrb[0].mxu0
        %v1597 = vadd.f32 0.0, %v1596
        %v1598 = vpop.f32.mrb[0].mxu0
        %1599 = vmatprep.mubr.f32.mxu0 0.0
        %1600 = vmatmul.mubr.f32.gmra.mrb[0].mxu0 %v1503
        %v1601 = vpop.f32.mrb[0].mxu0
        %v1602 = vadd.f32 0.0, %v1601
        %v1603 = vpop.f32.mrb[0].mxu0
        %1604 = vmatprep.mubr.f32.mxu0 0.0
        %1605 = vmatmul.mubr.f32.gmra.mrb[0].mxu0 %v586
        %v1606 = vpop.f32.mrb[0].mxu0
        %v1607 = vadd.f32 0.0, %v1606
        %v1608 = vpop.f32.mrb[0].mxu0
        %1609 = vdwg.mxu0
        %v1610 = vadd.f32 %v1491, %v1572
        %v1611 = vadd.f32 %v1492, %v1577
        %v1612 = vadd.f32 %v1493, %v1582
        %v1613 = vadd.f32 %v1494, %v1587
        %v1614 = vadd.f32 %v1495, %v1592
        %v1615 = vadd.f32 %v1496, %v1597
        %v1616 = vadd.f32 %v1497, %v1602
        %v1617 = vadd.f32 %v1498, %v1607
        %s1618 = scalar_lea.vmem %s4, 64
        %v1619 = vld [vmem:[%s1618] sm:$0xff]
        %1620 = vmatprep.subr.mxu0 0.0
        %1621 = vmatpush1.msra.mxu0 %v1619
        %1622 = vmatprep.subr.mxu0 0.0
        %1623 = vmatpush1.msra.mxu0 0.0
        %1624 = vmatprep.subr.mxu0 0.0
        %1625 = vmatpush1.msra.mxu0 0.0
        %1626 = vmatprep.subr.mxu0 0.0
        %1627 = vmatpush1.msra.mxu0 0.0
        %1628 = vmatprep.subr.mxu0 0.0
        %1629 = vmatpush1.msra.mxu0 0.0
        %1630 = vmatprep.subr.mxu0 0.0
        %1631 = vmatpush1.msra.mxu0 0.0
        %1632 = vmatprep.subr.mxu0 0.0
        %1633 = vmatpush1.msra.mxu0 0.0
        %1634 = vmatprep.subr.mxu0 0.0
        %1635 = vmatpush1.msra.mxu0 0.0
        %1636 = vmatprep.subr.mxu0 0.0
        %1637 = vmatpush1.msra.mxu0 0.0
        %1638 = vmatprep.subr.mxu0 0.0
        %1639 = vmatpush1.msra.mxu0 0.0
        %1640 = vmatprep.subr.mxu0 0.0
        %1641 = vmatpush1.msra.mxu0 0.0
        %1642 = vmatprep.subr.mxu0 0.0
        %1643 = vmatpush1.msra.mxu0 0.0
        %1644 = vmatprep.subr.mxu0 0.0
        %1645 = vmatpush1.msra.mxu0 0.0
        %1646 = vmatprep.subr.mxu0 0.0
        %1647 = vmatpush1.msra.mxu0 0.0
        %1648 = vmatprep.subr.mxu0 0.0
        %1649 = vmatpush1.msra.mxu0 0.0
        %1650 = vmatprep.subr.mxu0 0.0
        %1651 = vmatpush1.msra.mxu0 0.0
        %1652 = vmatprep.subr.mxu0 0.0
        %1653 = vmatpush1.msra.mxu0 0.0
        %1654 = vmatprep.subr.mxu0 0.0
        %1655 = vmatpush1.msra.mxu0 0.0
        %1656 = vmatprep.subr.mxu0 0.0
        %1657 = vmatpush1.msra.mxu0 0.0
        %1658 = vmatprep.subr.mxu0 0.0
        %1659 = vmatpush1.msra.mxu0 0.0
        %1660 = vmatprep.subr.mxu0 0.0
        %1661 = vmatpush1.msra.mxu0 0.0
        %1662 = vmatprep.subr.mxu0 0.0
        %1663 = vmatpush1.msra.mxu0 0.0
        %1664 = vmatprep.subr.mxu0 0.0
        %1665 = vmatpush1.msra.mxu0 0.0
        %1666 = vmatprep.subr.mxu0 0.0
        %1667 = vmatpush1.msra.mxu0 0.0
        %1668 = vmatprep.subr.mxu0 0.0
        %1669 = vmatpush1.msra.mxu0 0.0
        %1670 = vmatprep.subr.mxu0 0.0
        %1671 = vmatpush1.msra.mxu0 0.0
        %1672 = vmatprep.subr.mxu0 0.0
        %1673 = vmatpush1.msra.mxu0 0.0
        %1674 = vmatprep.subr.mxu0 0.0
        %1675 = vmatpush1.msra.mxu0 0.0
        %1676 = vmatprep.subr.mxu0 0.0
        %1677 = vmatpush1.msra.mxu0 0.0
        %1678 = vmatprep.subr.mxu0 0.0
        %1679 = vmatpush1.msra.mxu0 0.0
        %1680 = vmatprep.subr.mxu0 0.0
        %1681 = vmatpush1.msra.mxu0 0.0
        %1682 = vmatprep.subr.mxu0 0.0
        %1683 = vmatpush1.msra.mxu0 0.0
        %1684 = vmatprep.mubr.f32.mxu0 0.0
        %1685 = vmatmul.mubr.f32.gmra.mrb[0].mxu0 %v875
        %v1686 = vpop.f32.mrb[0].mxu0
        %v1687 = vadd.f32 0.0, %v1686
        %v1688 = vpop.f32.mrb[0].mxu0
        %1689 = vmatprep.mubr.f32.mxu0 0.0
        %1690 = vmatmul.mubr.f32.gmra.mrb[0].mxu0 %v878
        %v1691 = vpop.f32.mrb[0].mxu0
        %v1692 = vadd.f32 0.0, %v1691
        %v1693 = vpop.f32.mrb[0].mxu0
        %1694 = vmatprep.mubr.f32.mxu0 0.0
        %1695 = vmatmul.mubr.f32.gmra.mrb[0].mxu0 %v881
        %v1696 = vpop.f32.mrb[0].mxu0
        %v1697 = vadd.f32 0.0, %v1696
        %v1698 = vpop.f32.mrb[0].mxu0
        %1699 = vmatprep.mubr.f32.mxu0 0.0
        %1700 = vmatmul.mubr.f32.gmra.mrb[0].mxu0 %v884
        %v1701 = vpop.f32.mrb[0].mxu0
        %v1702 = vadd.f32 0.0, %v1701
        %v1703 = vpop.f32.mrb[0].mxu0
        %1704 = vmatprep.mubr.f32.mxu0 0.0
        %1705 = vmatmul.mubr.f32.gmra.mrb[0].mxu0 %v887
        %v1706 = vpop.f32.mrb[0].mxu0
        %v1707 = vadd.f32 0.0, %v1706
        %v1708 = vpop.f32.mrb[0].mxu0
        %1709 = vmatprep.mubr.f32.mxu0 0.0
        %1710 = vmatmul.mubr.f32.gmra.mrb[0].mxu0 %v890
        %v1711 = vpop.f32.mrb[0].mxu0
        %v1712 = vadd.f32 0.0, %v1711
        %v1713 = vpop.f32.mrb[0].mxu0
        %1714 = vmatprep.mubr.f32.mxu0 0.0
        %1715 = vmatmul.mubr.f32.gmra.mrb[0].mxu0 %v1269
        %v1716 = vpop.f32.mrb[0].mxu0
        %v1717 = vadd.f32 0.0, %v1716
        %v1718 = vpop.f32.mrb[0].mxu0
        %1719 = vmatprep.mubr.f32.mxu0 0.0
        %1720 = vmatmul.mubr.f32.gmra.mrb[0].mxu0 %v586
        %v1721 = vpop.f32.mrb[0].mxu0
        %v1722 = vadd.f32 0.0, %v1721
        %v1723 = vpop.f32.mrb[0].mxu0
        %1724 = vdwg.mxu0
        %v1725 = vadd.f32 %v1610, %v1687
        %v1726 = vadd.f32 %v1611, %v1692
        %v1727 = vadd.f32 %v1612, %v1697
        %v1728 = vadd.f32 %v1613, %v1702
        %v1729 = vadd.f32 %v1614, %v1707
        %v1730 = vadd.f32 %v1615, %v1712
        %v1731 = vadd.f32 %v1616, %v1717
        %v1732 = vadd.f32 %v1617, %v1722
        %v1733 = vld [vmem:[%s5] sm:$0x1]
        %v1735 = vlaneseq
        %v1736 = vshrl.u32 %v1735, 7
        %v1737 = vsub.s32 0, %v1736
        %v1738 = vrot.slane %v1733, %v1737
        %v1740 = vmul.f32 %v1725, %v1738
        %v1741 = vmul.f32 %v1726, %v1738
        %v1742 = vmul.f32 %v1727, %v1738
        %v1743 = vmul.f32 %v1728, %v1738
        %v1744 = vmul.f32 %v1729, %v1738
        %v1745 = vmul.f32 %v1730, %v1738
        %v1746 = vmul.f32 %v1731, %v1738
        %v1747 = vmul.f32 %v1732, %v1738
        %v1748 = vld [vmem:[%s6] sm:$0x1]
        %v1750 = vlaneseq
        %v1751 = vshrl.u32 %v1750, 7
        %v1752 = vsub.s32 0, %v1751
        %v1753 = vrot.slane %v1748, %v1752
        %v1755 = vadd.f32 %v1740, %v1753
        %v1756 = vadd.f32 %v1741, %v1753
        %v1757 = vadd.f32 %v1742, %v1753
        %v1758 = vadd.f32 %v1743, %v1753
        %v1759 = vadd.f32 %v1744, %v1753
        %v1760 = vadd.f32 %v1745, %v1753
        %v1761 = vadd.f32 %v1746, %v1753
        %v1762 = vadd.f32 %v1747, %v1753
        %v1763 = vmax.f32 %v1755, 0.0
        %v1764 = vmax.f32 %v1756, 0.0
        %v1765 = vmax.f32 %v1757, 0.0
        %v1766 = vmax.f32 %v1758, 0.0
        %v1767 = vmax.f32 %v1759, 0.0
        %v1768 = vmax.f32 %v1760, 0.0
        %v1769 = vmax.f32 %v1761, 0.0
        %v1770 = vmax.f32 %v1762, 0.0
        %v1771 = vld [vmem:[%s7] sm:$0xff]
        %v1773 = vsel %vm584, %v1763, 0
        %v1776 = vsel %vm584, %v1764, 0
        %v1779 = vsel %vm584, %v1765, 0
        %v1782 = vsel %vm584, %v1766, 0
        %v1785 = vsel %vm584, %v1767, 0
        %v1788 = vsel %vm584, %v1768, 0
        %v1791 = vsel %vm584, %v1769, 0
        %v1794 = vsel %vm584, %v1770, 0
        %1796 = vmatprep.subr.mxu0 0.0
        %1797 = vmatpush1.msra.mxu0 %v1771
        %1798 = vmatprep.subr.mxu0 0.0
        %1799 = vmatpush1.msra.mxu0 0.0
        %1800 = vmatprep.subr.mxu0 0.0
        %1801 = vmatpush1.msra.mxu0 0.0
        %1802 = vmatprep.subr.mxu0 0.0
        %1803 = vmatpush1.msra.mxu0 0.0
        %1804 = vmatprep.subr.mxu0 0.0
        %1805 = vmatpush1.msra.mxu0 0.0
        %1806 = vmatprep.subr.mxu0 0.0
        %1807 = vmatpush1.msra.mxu0 0.0
        %1808 = vmatprep.subr.mxu0 0.0
        %1809 = vmatpush1.msra.mxu0 0.0
        %1810 = vmatprep.subr.mxu0 0.0
        %1811 = vmatpush1.msra.mxu0 0.0
        %1812 = vmatprep.subr.mxu0 0.0
        %1813 = vmatpush1.msra.mxu0 0.0
        %1814 = vmatprep.subr.mxu0 0.0
        %1815 = vmatpush1.msra.mxu0 0.0
        %1816 = vmatprep.subr.mxu0 0.0
        %1817 = vmatpush1.msra.mxu0 0.0
        %1818 = vmatprep.subr.mxu0 0.0
        %1819 = vmatpush1.msra.mxu0 0.0
        %1820 = vmatprep.subr.mxu0 0.0
        %1821 = vmatpush1.msra.mxu0 0.0
        %1822 = vmatprep.subr.mxu0 0.0
        %1823 = vmatpush1.msra.mxu0 0.0
        %1824 = vmatprep.subr.mxu0 0.0
        %1825 = vmatpush1.msra.mxu0 0.0
        %1826 = vmatprep.subr.mxu0 0.0
        %1827 = vmatpush1.msra.mxu0 0.0
        %1828 = vmatprep.subr.mxu0 0.0
        %1829 = vmatpush1.msra.mxu0 0.0
        %1830 = vmatprep.subr.mxu0 0.0
        %1831 = vmatpush1.msra.mxu0 0.0
        %1832 = vmatprep.subr.mxu0 0.0
        %1833 = vmatpush1.msra.mxu0 0.0
        %1834 = vmatprep.subr.mxu0 0.0
        %1835 = vmatpush1.msra.mxu0 0.0
        %1836 = vmatprep.subr.mxu0 0.0
        %1837 = vmatpush1.msra.mxu0 0.0
        %1838 = vmatprep.subr.mxu0 0.0
        %1839 = vmatpush1.msra.mxu0 0.0
        %1840 = vmatprep.subr.mxu0 0.0
        %1841 = vmatpush1.msra.mxu0 0.0
        %1842 = vmatprep.subr.mxu0 0.0
        %1843 = vmatpush1.msra.mxu0 0.0
        %1844 = vmatprep.subr.mxu0 0.0
        %1845 = vmatpush1.msra.mxu0 0.0
        %1846 = vmatprep.subr.mxu0 0.0
        %1847 = vmatpush1.msra.mxu0 0.0
        %1848 = vmatprep.subr.mxu0 0.0
        %1849 = vmatpush1.msra.mxu0 0.0
        %1850 = vmatprep.subr.mxu0 0.0
        %1851 = vmatpush1.msra.mxu0 0.0
        %1852 = vmatprep.subr.mxu0 0.0
        %1853 = vmatpush1.msra.mxu0 0.0
        %1854 = vmatprep.subr.mxu0 0.0
        %1855 = vmatpush1.msra.mxu0 0.0
        %1856 = vmatprep.subr.mxu0 0.0
        %1857 = vmatpush1.msra.mxu0 0.0
        %1858 = vmatprep.subr.mxu0 0.0
        %1859 = vmatpush1.msra.mxu0 0.0
        %1860 = vmatprep.mubr.f32.mxu0 0.0
        %1861 = vmatmul.mubr.f32.gmra.mrb[0].mxu0 %v1773
        %v1862 = vpop.f32.mrb[0].mxu0
        %v1863 = vadd.f32 0.0, %v1862
        %v1864 = vpop.f32.mrb[0].mxu0
        %1865 = vmatprep.mubr.f32.mxu0 0.0
        %1866 = vmatmul.mubr.f32.gmra.mrb[0].mxu0 %v1776
        %v1867 = vpop.f32.mrb[0].mxu0
        %v1868 = vadd.f32 0.0, %v1867
        %v1869 = vpop.f32.mrb[0].mxu0
        %1870 = vmatprep.mubr.f32.mxu0 0.0
        %1871 = vmatmul.mubr.f32.gmra.mrb[0].mxu0 %v1779
        %v1872 = vpop.f32.mrb[0].mxu0
        %v1873 = vadd.f32 0.0, %v1872
        %v1874 = vpop.f32.mrb[0].mxu0
        %1875 = vmatprep.mubr.f32.mxu0 0.0
        %1876 = vmatmul.mubr.f32.gmra.mrb[0].mxu0 %v1782
        %v1877 = vpop.f32.mrb[0].mxu0
        %v1878 = vadd.f32 0.0, %v1877
        %v1879 = vpop.f32.mrb[0].mxu0
        %1880 = vmatprep.mubr.f32.mxu0 0.0
        %1881 = vmatmul.mubr.f32.gmra.mrb[0].mxu0 %v1785
        %v1882 = vpop.f32.mrb[0].mxu0
        %v1883 = vadd.f32 0.0, %v1882
        %v1884 = vpop.f32.mrb[0].mxu0
        %1885 = vmatprep.mubr.f32.mxu0 0.0
        %1886 = vmatmul.mubr.f32.gmra.mrb[0].mxu0 %v1788
        %v1887 = vpop.f32.mrb[0].mxu0
        %v1888 = vadd.f32 0.0, %v1887
        %v1889 = vpop.f32.mrb[0].mxu0
        %1890 = vmatprep.mubr.f32.mxu0 0.0
        %1891 = vmatmul.mubr.f32.gmra.mrb[0].mxu0 %v1791
        %v1892 = vpop.f32.mrb[0].mxu0
        %v1893 = vadd.f32 0.0, %v1892
        %v1894 = vpop.f32.mrb[0].mxu0
        %1895 = vmatprep.mubr.f32.mxu0 0.0
        %1896 = vmatmul.mubr.f32.gmra.mrb[0].mxu0 %v1794
        %v1897 = vpop.f32.mrb[0].mxu0
        %v1898 = vadd.f32 0.0, %v1897
        %v1899 = vpop.f32.mrb[0].mxu0
        %1900 = vdwg.mxu0
        %v1901 = vld [vmem:[%s8] sm:$0x1]
        %v1903 = vlaneseq
        %v1904 = vshrl.u32 %v1903, 7
        %v1905 = vsub.s32 0, %v1904
        %v1906 = vrot.slane %v1901, %v1905
        %v1908 = vmul.f32 %v1863, %v1906
        %v1909 = vmul.f32 %v1868, %v1906
        %v1910 = vmul.f32 %v1873, %v1906
        %v1911 = vmul.f32 %v1878, %v1906
        %v1912 = vmul.f32 %v1883, %v1906
        %v1913 = vmul.f32 %v1888, %v1906
        %v1914 = vmul.f32 %v1893, %v1906
        %v1915 = vmul.f32 %v1898, %v1906
        %v1916 = vld [vmem:[%s9] sm:$0x1]
        %v1918 = vlaneseq
        %v1919 = vshrl.u32 %v1918, 7
        %v1920 = vsub.s32 0, %v1919
        %v1921 = vrot.slane %v1916, %v1920
        %v1923 = vadd.f32 %v1908, %v1921
        %v1924 = vadd.f32 %v1909, %v1921
        %v1925 = vadd.f32 %v1910, %v1921
        %v1926 = vadd.f32 %v1911, %v1921
        %v1927 = vadd.f32 %v1912, %v1921
        %v1928 = vadd.f32 %v1913, %v1921
        %v1929 = vadd.f32 %v1914, %v1921
        %v1930 = vadd.f32 %v1915, %v1921
        %v1931 = vadd.f32 %v1923, %v358
        %v1932 = vadd.f32 %v1924, %v359
        %v1933 = vadd.f32 %v1925, %v360
        %v1934 = vadd.f32 %v1926, %v361
        %v1935 = vadd.f32 %v1927, %v362
        %v1936 = vadd.f32 %v1928, %v363
        %v1937 = vadd.f32 %v1929, %v364
        %v1938 = vadd.f32 %v1930, %v365
        %v1939 = vmax.f32 %v1931, 0.0
        %v1940 = vmax.f32 %v1932, 0.0
        %v1941 = vmax.f32 %v1933, 0.0
        %v1942 = vmax.f32 %v1934, 0.0
        %v1943 = vmax.f32 %v1935, 0.0
        %v1944 = vmax.f32 %v1936, 0.0
        %v1945 = vmax.f32 %v1937, 0.0
        %v1946 = vmax.f32 %v1938, 0.0
        %1947 = vst.msk [vmem:[%s352] sm:$0xff] %vm370, %v1939
        %1948 = vst.msk [vmem:[%s352 + $0x8] sm:$0xff] %vm370, %v1940
        %1949 = vst.msk [vmem:[%s352 + $0x10] sm:$0xff] %vm370, %v1941
        %1950 = vst.msk [vmem:[%s352 + $0x18] sm:$0xff] %vm370, %v1942
        %1951 = vst.msk [vmem:[%s352 + $0x20] sm:$0xff] %vm370, %v1943
        %1952 = vst.msk [vmem:[%s352 + $0x28] sm:$0xff] %vm370, %v1944
        %1953 = vst.msk [vmem:[%s352 + $0x30] sm:$0xff] %vm370, %v1945
        %1954 = vst.msk [vmem:[%s352 + $0x38] sm:$0xff] %vm370, %v1946
        %s1955 = sand.u32 %s247, 1
        %s1956 = scalar_lea.sflag [#allocation3], %s1955
        %s1957 = sand.u32 %s247, 1
        %s1958 = smul.addr %s1957, 64
        %s1959 = scalar_lea.vmem [#allocation2], %s1958
        // Predicated region
        $region61: #{tpu_custom_call.1} parent=59 // pred_check
          %p1960 = pneg %p257
        $region62: #{tpu_custom_call.1} parent=59 // pred_check_branch
          %1962 = sbr.rel (%p1960) target = $region64
        $region63: #{tpu_custom_call.1} parent=59 // pred_region
          %s1964 = ssub.s32 1024, 1024
          %1965 = vsyncadd %s1956, %s1964
          %s1966 = smul.addr %s24, 8
          %s1967 = smul.addr %s1966, 128
          %s1968 = scalar_lea.hbm %s10, %s1967
          %s1969 = sshll.u32 %s1959, 4
          %s1970 = int_to_ptr.vmem [resolvable:$true] %s1969
          %1975 = dma.vmem_to_hbm [thread:$0]  %s1970, 1024, %s1968, %s1956, 128, 128, 8
        $region64: #{tpu_custom_call.1} parent=59 // pred_fallthru
          _
      $region60: #{tpu_custom_call.1} parent=5 // pred_fallthru
        _
      %p1976 = scmp.le.s32.totalorder 2, %s19
      // Predicated region
      $region65: #{tpu_custom_call.1} parent=5 // pred_check
        %p1977 = pneg %p1976
      $region66: #{tpu_custom_call.1} parent=5 // pred_check_branch
        %1979 = sbr.rel (%p1977) target = $region68
      $region67: #{tpu_custom_call.1} parent=5 // pred_region
        %s1980 = ssub.s32 %s19, 2
        // Predicated region
        $region69: #{tpu_custom_call.1} parent=67 // pred_check
          %p1981 = pneg %p263
        $region70: #{tpu_custom_call.1} parent=67 // pred_check_branch
          %1983 = sbr.rel (%p1981) target = $region72
        $region71: #{tpu_custom_call.1} parent=67 // pred_region
          %s1984 = sand.u32 %s248, 1
          %s1985 = scalar_lea.sflag [#allocation3], %s1984
          %s1986 = sand.u32 %s248, 1
          %s1987 = smul.addr %s1986, 64
          %s1988 = scalar_lea.vmem [#allocation2], %s1987
          %1989 = dma.done %s1985, 1024
        $region72: #{tpu_custom_call.1} parent=67 // pred_fallthru
          _
      $region68: #{tpu_custom_call.1} parent=5 // pred_fallthru
        _
    $region6: #{tpu_custom_call.1} parent=1 // loop_footer
      %s23 = sadd.s32 1, %s19
    $region7: #{tpu_custom_call.1} parent=1 // loop_footer_branch
      %18 = sbr.rel target = $region3
    $region8: #{tpu_custom_call.1} parent=1 // loop_exit
      _
    %1990 = vsyncpa [#allocation3], 1
    %s1991 = scalar_lea.sflag [#allocation3], 1
    %1992 = vsyncpa %s1991, 1

</llo_original>
